<compile_context>
chip_gen: v6e
topology: v6e:2x2x1
jax: 0.10.0
libtpu: 0.0.40
codegen_flags: <defaults>
</compile_context>

<pallas_src>
import functools

import jax
import jax.numpy as jnp
from jax.experimental import pallas as pl
from jax.experimental.pallas import tpu as pltpu


def _lstm_kernel(x_ref, wih_ref, whh_ref, b_ref, wfc_ref, bfc_ref,
                 out_ref, xproj_scr, hseq_scr,
                 *, num_layers, hidden_dim, seq_len, batch_pad):
    """Single invocation: full sequence, all layers, plus fc projection.

    x_ref     : (T*Bp, H)   embedded inputs, time-major rows (t*Bp + b)
    wih_ref   : (L, H, 4H)  input->gates weights (pre-transposed)
    whh_ref   : (L, H, 4H)  hidden->gates weights (pre-transposed)
    b_ref     : (L, 1, 4H)  b_ih + b_hh
    wfc_ref   : (H, V)      fc weight (pre-transposed)
    bfc_ref   : (1, V)      fc bias
    out_ref   : (T*Bp, V)   logits
    xproj_scr : (T*Bp, 4H)  staged input projections for all timesteps (VMEM)
    hseq_scr  : (T*Bp, H)   current layer's output sequence (VMEM)
    """
    H = hidden_dim
    T = seq_len
    Bp = batch_pad

    for layer in range(num_layers):
        w_ih = wih_ref[layer]      # (H, 4H)
        w_hh = whh_ref[layer]      # (H, 4H)
        bias = b_ref[layer]        # (1, 4H)
        in_ref = x_ref if layer == 0 else hseq_scr

        # --- Input projection for ALL timesteps as ONE matmul: independent of
        #     the recurrence, fully off the serial critical path.  One MXU
        #     weight push + one broadcast bias add per layer. ---
        xproj_scr[...] = (
            jnp.dot(in_ref[...], w_ih, preferred_element_type=jnp.float32)
            + bias
        )

        # NOTE(RAW hazard): for layer >= 1, hseq_scr is both this layer's
        # input (fully consumed by the staged projection above) and this
        # layer's output (written per step below).  This is only correct
        # because the projection completes before any recurrence write --
        # do NOT interleave/pipeline these two phases.

        # --- Serial recurrence: only h @ W_hh + gate math per step; h/c are
        #     carried in vregs (no VMEM round-trip). ---
        def step(t, carry):
            h, c = carry
            row = pl.multiple_of(t * Bp, Bp)            # sublane-aligned row
            gates = xproj_scr[pl.ds(row, Bp), :] + jnp.dot(
                h, w_hh, preferred_element_type=jnp.float32)   # (Bp, 4H)
            # PyTorch LSTM gate ordering: i, f, g, o.  Compute sigmoid/tanh
            # once on the full 4H-lane vreg (3 EUP passes/step instead of 5),
            # then take lane slices.
            sig = jax.nn.sigmoid(gates)
            tnh = jnp.tanh(gates)
            i_g = sig[:, 0 * H:1 * H]
            f_g = sig[:, 1 * H:2 * H]
            g_g = tnh[:, 2 * H:3 * H]
            o_g = sig[:, 3 * H:4 * H]
            c_new = f_g * c + i_g * g_g
            h_new = o_g * jnp.tanh(c_new)
            hseq_scr[pl.ds(row, Bp), :] = h_new
            return (h_new, c_new)

        zeros = jnp.zeros((Bp, H), jnp.float32)
        jax.lax.fori_loop(0, T, step, (zeros, zeros), unroll=True)

    # --- Final fc projection: one matmul over all timesteps, one bulk store
    #     of the whole (T*Bp, V) output block back to HBM. ---
    out_ref[...] = (
        jnp.dot(hseq_scr[...], wfc_ref[...],
                preferred_element_type=jnp.float32)
        + bfc_ref[...]
    )


def lstm_fc_pallas(x_emb_2d, w_ih_t, w_hh_t, bias, w_fc_t, b_fc,
                   *, num_layers, hidden_dim, seq_len, batch_pad):
    """Run stacked LSTM + fc over the whole sequence in ONE kernel invocation.

    x_emb_2d : (T*Bp, H) float32, time-major rows (t*Bp + b), batch zero-padded
    returns  : (T*Bp, V) float32
    """
    T, Bp, H = seq_len, batch_pad, hidden_dim
    V = w_fc_t.shape[1]
    rows = T * Bp

    kernel = functools.partial(
        _lstm_kernel, num_layers=num_layers, hidden_dim=hidden_dim,
        seq_len=T, batch_pad=Bp)

    grid_spec = pltpu.PrefetchScalarGridSpec(
        num_scalar_prefetch=0,
        grid=(1,),                                              # collapsed grid
        in_specs=[
            pl.BlockSpec((rows, H), lambda i: (0, 0)),          # x_emb (full)
            pl.BlockSpec(w_ih_t.shape, lambda i: (0, 0, 0)),    # W_ih^T
            pl.BlockSpec(w_hh_t.shape, lambda i: (0, 0, 0)),    # W_hh^T
            pl.BlockSpec(bias.shape, lambda i: (0, 0, 0)),      # biases
            pl.BlockSpec(w_fc_t.shape, lambda i: (0, 0)),       # W_fc^T
            pl.BlockSpec(b_fc.shape, lambda i: (0, 0)),         # b_fc
        ],
        out_specs=pl.BlockSpec((rows, V), lambda i: (0, 0)),
        scratch_shapes=[
            pltpu.VMEM((rows, 4 * H), jnp.float32),   # staged input projections
            pltpu.VMEM((rows, H), jnp.float32),       # per-layer hidden sequence
        ],
    )

    return pl.pallas_call(
        kernel,
        out_shape=jax.ShapeDtypeStruct((rows, V), jnp.float32),
        grid_spec=grid_spec,
        compiler_params=pltpu.CompilerParams(
            dimension_semantics=("arbitrary",)),
    )(x_emb_2d, w_ih_t, w_hh_t, bias, w_fc_t, b_fc)


class GFNLSTMGeneratorPallas:
    """JAX/Pallas re-implementation of GFNLSTMGenerator.forward."""

    def __init__(self, key, *, vocab_size=4, hidden_dim=32, num_layers=2,
                 partition_init=5.0):
        self.vocab_size = vocab_size
        self.num_tokens = vocab_size + 1           # +1 for start token
        self.start_token = self.num_tokens - 1
        self.hidden_dim = hidden_dim
        self.num_layers = num_layers

        H, L, NT = hidden_dim, num_layers, self.num_tokens
        keys = jax.random.split(key, 4 + 4 * L)

        # Embedding (num_tokens, H)
        self.embedding = 0.1 * jax.random.normal(keys[0], (NT, H), jnp.float32)

        # LSTM weights, PyTorch layout: W_ih (4H, H), W_hh (4H, H), biases (4H,)
        w_ih, w_hh, b_ih, b_hh = [], [], [], []
        for l in range(L):
            k0, k1, k2, k3 = keys[4 + 4 * l: 8 + 4 * l]
            w_ih.append(0.1 * jax.random.normal(k0, (4 * H, H), jnp.float32))
            w_hh.append(0.1 * jax.random.normal(k1, (4 * H, H), jnp.float32))
            b_ih.append(0.1 * jax.random.normal(k2, (4 * H,), jnp.float32))
            b_hh.append(0.1 * jax.random.normal(k3, (4 * H,), jnp.float32))
        # Pre-transpose for the kernel: (L, H, 4H), combined bias (L, 1, 4H)
        self.w_ih_t = jnp.stack([w.T for w in w_ih])
        self.w_hh_t = jnp.stack([w.T for w in w_hh])
        self.bias = jnp.stack([(bi + bh)[None, :] for bi, bh in zip(b_ih, b_hh)])

        # fc: Linear(H, num_tokens - 1)
        V = NT - 1
        self.w_fc_t = (0.1 * jax.random.normal(keys[1], (V, H), jnp.float32)).T
        self.b_fc = (0.1 * jax.random.normal(keys[2], (V,), jnp.float32))[None, :]

        # _Z parameter (kept for parity with the module; not used in forward)
        self._Z = jnp.ones((64,), jnp.float32) * partition_init / 64.0

    @property
    def Z(self):
        return self._Z.sum()

    def forward(self, batched_sequence_data):
        """batched_sequence_data: int tokens [B, L] -> logits [B, L, V]."""
        B, L = batched_sequence_data.shape
        H = self.hidden_dim

        # Positions fed to the LSTM: [start, x_0, ..., x_{L-2}].  The final
        # input position's logits are dropped by the module (logits[:, :-1]),
        # so it is skipped entirely.
        start = jnp.full((B, 1), self.start_token,
                         dtype=batched_sequence_data.dtype)
        seq = jnp.concatenate([start, batched_sequence_data], axis=1)[:, :L]

        x_emb = self.embedding[seq].astype(jnp.float32)          # [B, L, H]
        x_tbh = jnp.transpose(x_emb, (1, 0, 2))                  # [L, B, H]

        # Pad batch up to a full 8-sublane tile with zeros (free compute; the
        # padded rows are sliced away below so nothing can propagate).
        Bp = ((B + 7) // 8) * 8
        x_tbh = jnp.pad(x_tbh, ((0, 0), (0, Bp - B), (0, 0)))    # [L, Bp, H]
        x_2d = x_tbh.reshape(L * Bp, H)                          # [L*Bp, H]

        out_2d = lstm_fc_pallas(
            x_2d, self.w_ih_t, self.w_hh_t, self.bias,
            self.w_fc_t, self.b_fc,
            num_layers=self.num_layers, hidden_dim=H,
            seq_len=L, batch_pad=Bp)                             # [L*Bp, V]

        out = out_2d.reshape(L, Bp, -1)[:, :B]                   # [L, B, V]
        return jnp.transpose(out, (1, 0, 2))                     # [B, L, V]

    # Pure-JAX reference of the same forward (full T = L+1 positions, then
    # slice the last off — exactly the PyTorch module's computation order).
    def forward_reference(self, batched_sequence_data):
        B, L = batched_sequence_data.shape
        start = jnp.full((B, 1), self.start_token,
                         dtype=batched_sequence_data.dtype)
        seq = jnp.concatenate([start, batched_sequence_data], axis=1)
        x = self.embedding[seq].astype(jnp.float32)           # [B, T, H]
        H = self.hidden_dim

        def cell(carry, x_t, layer):
            h, c = carry
            gates = (x_t @ self.w_ih_t[layer] + h @ self.w_hh_t[layer]
                     + self.bias[layer])
            i = jax.nn.sigmoid(gates[:, 0 * H:1 * H])
            f = jax.nn.sigmoid(gates[:, 1 * H:2 * H])
            g = jnp.tanh(gates[:, 2 * H:3 * H])
            o = jax.nn.sigmoid(gates[:, 3 * H:4 * H])
            c = f * c + i * g
            h = o * jnp.tanh(c)
            return (h, c), h

        layer_in = jnp.transpose(x, (1, 0, 2))                 # [T, B, H]
        for layer in range(self.num_layers):
            h0 = jnp.zeros((B, H), jnp.float32)
            c0 = jnp.zeros((B, H), jnp.float32)
            (_, _), ys = jax.lax.scan(
                lambda carry, xt: cell(carry, xt, layer), (h0, c0), layer_in)
            layer_in = ys
        out = layer_in @ self.w_fc_t + self.b_fc               # [T, B, V]
        return jnp.transpose(out, (1, 0, 2))[:, :-1]


if __name__ == "__main__":
    key = jax.random.PRNGKey(0)
    k_model, k_data = jax.random.split(key)

    vocab_size = 4      # -> num_tokens = 5, matches LSTMModel default num_tokens=5
    hidden_dim = 32
    num_layers = 2
    batch = 2
    seq_len = 8

    gen = GFNLSTMGeneratorPallas(
        k_model, vocab_size=vocab_size, hidden_dim=hidden_dim,
        num_layers=num_layers)

    tokens = jax.random.randint(k_data, (batch, seq_len), 0, vocab_size,
                                jnp.int32)

    logits = gen.forward(tokens)
    jax.block_until_ready(logits)

    assert logits.shape == (batch, seq_len, vocab_size), logits.shape

    ref = gen.forward_reference(tokens)
    jax.block_until_ready(ref)
    assert jnp.allclose(logits, ref, rtol=1e-2, atol=1e-2), (
        "max diff %e" % float(jnp.max(jnp.abs(logits - ref))))

    print("KERNEL_OK")
</pallas_src>

<mosaic_0001>
module attributes {stable_mosaic.version = 11 : i64} {
  func.func @_lstm_kernel(%arg0: i32, %arg1: memref<64x32xf32, #tpu.memory_space<vmem>>, %arg2: memref<2x32x128xf32, #tpu.memory_space<vmem>>, %arg3: memref<2x32x128xf32, #tpu.memory_space<vmem>>, %arg4: memref<2x1x128xf32, #tpu.memory_space<vmem>>, %arg5: memref<32x4xf32, #tpu.memory_space<vmem>>, %arg6: memref<1x4xf32, #tpu.memory_space<vmem>>, %arg7: memref<64x4xf32, #tpu.memory_space<vmem>>, %arg8: memref<64x128xf32, #tpu.memory_space<vmem>>, %arg9: memref<64x32xf32, #tpu.memory_space<vmem>>) attributes {dimension_semantics = [#tpu.dimension_semantics<arbitrary>], iteration_bounds = array<i64: 1>, scalar_prefetch = 0 : i64, scratch_operands = 2 : i64, tpu.core_type = #tpu.core_type<tc>, window_params = [{pipeline_mode = #tpu.pipeline_mode<synchronous>, transform_indices = @transform_0, window_bounds = array<i64: 64, 32>}, {pipeline_mode = #tpu.pipeline_mode<synchronous>, transform_indices = @transform_1, window_bounds = array<i64: 2, 32, 128>}, {pipeline_mode = #tpu.pipeline_mode<synchronous>, transform_indices = @transform_2, window_bounds = array<i64: 2, 32, 128>}, {pipeline_mode = #tpu.pipeline_mode<synchronous>, transform_indices = @transform_3, window_bounds = array<i64: 2, 1, 128>}, {pipeline_mode = #tpu.pipeline_mode<synchronous>, transform_indices = @transform_4, window_bounds = array<i64: 32, 4>}, {pipeline_mode = #tpu.pipeline_mode<synchronous>, transform_indices = @transform_5, window_bounds = array<i64: 1, 4>}, {pipeline_mode = #tpu.pipeline_mode<synchronous>, transform_indices = @transform_6, window_bounds = array<i64: 64, 4>}]} {
    %c0 = arith.constant 0 : index
    %c0_0 = arith.constant 0 : index
    %c0_1 = arith.constant 0 : index
    %0 = vector.load %arg2[%c0, %c0_0, %c0_1] : memref<2x32x128xf32, #tpu.memory_space<vmem>>, vector<1x32x128xf32>
    %1 = vector.shape_cast %0 : vector<1x32x128xf32> to vector<32x128xf32>
    %c0_2 = arith.constant 0 : index
    %c0_3 = arith.constant 0 : index
    %c0_4 = arith.constant 0 : index
    %2 = vector.load %arg3[%c0_2, %c0_3, %c0_4] : memref<2x32x128xf32, #tpu.memory_space<vmem>>, vector<1x32x128xf32>
    %3 = vector.shape_cast %2 : vector<1x32x128xf32> to vector<32x128xf32>
    %c0_5 = arith.constant 0 : index
    %c0_6 = arith.constant 0 : index
    %c0_7 = arith.constant 0 : index
    %4 = vector.load %arg4[%c0_5, %c0_6, %c0_7] : memref<2x1x128xf32, #tpu.memory_space<vmem>>, vector<1x1x128xf32>
    %5 = vector.shape_cast %4 : vector<1x1x128xf32> to vector<1x128xf32>
    %c0_8 = arith.constant 0 : index
    %c0_9 = arith.constant 0 : index
    %6 = vector.load %arg1[%c0_8, %c0_9] : memref<64x32xf32, #tpu.memory_space<vmem>>, vector<64x32xf32>
    %cst = arith.constant dense<0.000000e+00> : vector<64x128xf32>
    %7 = tpu.matmul %6, %1, %cst {dimension_numbers = #tpu.dot_dimension_numbers<[1], [0], [0], [1], [0, 0, 1, 1], [], []>} : vector<64x32xf32>, vector<32x128xf32>, vector<64x128xf32> -> vector<64x128xf32>
    %8 = vector.broadcast %5 : vector<1x128xf32> to vector<64x128xf32>
    %9 = arith.addf %7, %8 : vector<64x128xf32>
    %c0_10 = arith.constant 0 : index
    %c0_11 = arith.constant 0 : index
    %10 = vector.load %arg8[%c0_10, %c0_11] : memref<64x128xf32, #tpu.memory_space<vmem>>, vector<64x128xf32>
    tpu.vector_store %arg8[%c0_10, %c0_11], %9 {strides = array<i32>} : memref<64x128xf32, #tpu.memory_space<vmem>>, vector<64x128xf32>,
    %cst_12 = arith.constant 0.000000e+00 : f32
    %11 = vector.broadcast %cst_12 : f32 to vector<8x32xf32>
    %c0_i32 = arith.constant 0 : i32
    %c8_i32 = arith.constant 8 : i32
    %12 = arith.muli %c0_i32, %c8_i32 : i32
    %13 = tpu.assume_multiple %12, 8 : i32
    %14 = arith.index_cast %13 : i32 to index
    %c0_13 = arith.constant 0 : index
    %15 = vector.load %arg8[%14, %c0_13] : memref<64x128xf32, #tpu.memory_space<vmem>>, vector<8x128xf32>
    %cst_14 = arith.constant dense<0.000000e+00> : vector<8x128xf32>
    %16 = tpu.matmul %11, %3, %cst_14 {dimension_numbers = #tpu.dot_dimension_numbers<[1], [0], [0], [1], [0, 0, 1, 1], [], []>} : vector<8x32xf32>, vector<32x128xf32>, vector<8x128xf32> -> vector<8x128xf32>
    %17 = arith.addf %15, %16 : vector<8x128xf32>
    %18 = arith.negf %17 : vector<8x128xf32>
    %19 = math.exp %18 : vector<8x128xf32>
    %cst_15 = arith.constant 1.000000e+00 : f32
    %20 = vector.broadcast %cst_15 : f32 to vector<8x128xf32>
    %21 = arith.addf %20, %19 : vector<8x128xf32>
    %22 = arith.divf %20, %21 : vector<8x128xf32>
    %23 = math.tanh %17 : vector<8x128xf32>
    %24 = vector.extract_strided_slice %22 {offsets = [0, 0], sizes = [8, 32], strides = [1, 1]} : vector<8x128xf32> to vector<8x32xf32>
    %25 = vector.extract_strided_slice %22 {offsets = [0, 32], sizes = [8, 32], strides = [1, 1]} : vector<8x128xf32> to vector<8x32xf32>
    %26 = vector.extract_strided_slice %23 {offsets = [0, 64], sizes = [8, 32], strides = [1, 1]} : vector<8x128xf32> to vector<8x32xf32>
    %27 = vector.extract_strided_slice %22 {offsets = [0, 96], sizes = [8, 32], strides = [1, 1]} : vector<8x128xf32> to vector<8x32xf32>
    %28 = arith.mulf %25, %11 : vector<8x32xf32>
    %29 = arith.mulf %24, %26 : vector<8x32xf32>
    %30 = arith.addf %28, %29 : vector<8x32xf32>
    %31 = math.tanh %30 : vector<8x32xf32>
    %32 = arith.mulf %27, %31 : vector<8x32xf32>
    %33 = arith.index_cast %13 : i32 to index
    %c0_16 = arith.constant 0 : index
    %34 = vector.load %arg9[%33, %c0_16] : memref<64x32xf32, #tpu.memory_space<vmem>>, vector<8x32xf32>
    tpu.vector_store %arg9[%33, %c0_16], %32 {strides = array<i32>} : memref<64x32xf32, #tpu.memory_space<vmem>>, vector<8x32xf32>,
    %c1_i32 = arith.constant 1 : i32
    %c8_i32_17 = arith.constant 8 : i32
    %35 = arith.muli %c1_i32, %c8_i32_17 : i32
    %36 = tpu.assume_multiple %35, 8 : i32
    %37 = arith.index_cast %36 : i32 to index
    %c0_18 = arith.constant 0 : index
    %38 = vector.load %arg8[%37, %c0_18] : memref<64x128xf32, #tpu.memory_space<vmem>>, vector<8x128xf32>
    %cst_19 = arith.constant dense<0.000000e+00> : vector<8x128xf32>
    %39 = tpu.matmul %32, %3, %cst_19 {dimension_numbers = #tpu.dot_dimension_numbers<[1], [0], [0], [1], [0, 0, 1, 1], [], []>} : vector<8x32xf32>, vector<32x128xf32>, vector<8x128xf32> -> vector<8x128xf32>
    %40 = arith.addf %38, %39 : vector<8x128xf32>
    %41 = arith.negf %40 : vector<8x128xf32>
    %42 = math.exp %41 : vector<8x128xf32>
    %cst_20 = arith.constant 1.000000e+00 : f32
    %43 = vector.broadcast %cst_20 : f32 to vector<8x128xf32>
    %44 = arith.addf %43, %42 : vector<8x128xf32>
    %45 = arith.divf %43, %44 : vector<8x128xf32>
    %46 = math.tanh %40 : vector<8x128xf32>
    %47 = vector.extract_strided_slice %45 {offsets = [0, 0], sizes = [8, 32], strides = [1, 1]} : vector<8x128xf32> to vector<8x32xf32>
    %48 = vector.extract_strided_slice %45 {offsets = [0, 32], sizes = [8, 32], strides = [1, 1]} : vector<8x128xf32> to vector<8x32xf32>
    %49 = vector.extract_strided_slice %46 {offsets = [0, 64], sizes = [8, 32], strides = [1, 1]} : vector<8x128xf32> to vector<8x32xf32>
    %50 = vector.extract_strided_slice %45 {offsets = [0, 96], sizes = [8, 32], strides = [1, 1]} : vector<8x128xf32> to vector<8x32xf32>
    %51 = arith.mulf %48, %30 : vector<8x32xf32>
    %52 = arith.mulf %47, %49 : vector<8x32xf32>
    %53 = arith.addf %51, %52 : vector<8x32xf32>
    %54 = math.tanh %53 : vector<8x32xf32>
    %55 = arith.mulf %50, %54 : vector<8x32xf32>
    %56 = arith.index_cast %36 : i32 to index
    %c0_21 = arith.constant 0 : index
    %57 = vector.load %arg9[%56, %c0_21] : memref<64x32xf32, #tpu.memory_space<vmem>>, vector<8x32xf32>
    tpu.vector_store %arg9[%56, %c0_21], %55 {strides = array<i32>} : memref<64x32xf32, #tpu.memory_space<vmem>>, vector<8x32xf32>,
    %c2_i32 = arith.constant 2 : i32
    %c8_i32_22 = arith.constant 8 : i32
    %58 = arith.muli %c2_i32, %c8_i32_22 : i32
    %59 = tpu.assume_multiple %58, 8 : i32
    %60 = arith.index_cast %59 : i32 to index
    %c0_23 = arith.constant 0 : index
    %61 = vector.load %arg8[%60, %c0_23] : memref<64x128xf32, #tpu.memory_space<vmem>>, vector<8x128xf32>
    %cst_24 = arith.constant dense<0.000000e+00> : vector<8x128xf32>
    %62 = tpu.matmul %55, %3, %cst_24 {dimension_numbers = #tpu.dot_dimension_numbers<[1], [0], [0], [1], [0, 0, 1, 1], [], []>} : vector<8x32xf32>, vector<32x128xf32>, vector<8x128xf32> -> vector<8x128xf32>
    %63 = arith.addf %61, %62 : vector<8x128xf32>
    %64 = arith.negf %63 : vector<8x128xf32>
    %65 = math.exp %64 : vector<8x128xf32>
    %cst_25 = arith.constant 1.000000e+00 : f32
    %66 = vector.broadcast %cst_25 : f32 to vector<8x128xf32>
    %67 = arith.addf %66, %65 : vector<8x128xf32>
    %68 = arith.divf %66, %67 : vector<8x128xf32>
    %69 = math.tanh %63 : vector<8x128xf32>
    %70 = vector.extract_strided_slice %68 {offsets = [0, 0], sizes = [8, 32], strides = [1, 1]} : vector<8x128xf32> to vector<8x32xf32>
    %71 = vector.extract_strided_slice %68 {offsets = [0, 32], sizes = [8, 32], strides = [1, 1]} : vector<8x128xf32> to vector<8x32xf32>
    %72 = vector.extract_strided_slice %69 {offsets = [0, 64], sizes = [8, 32], strides = [1, 1]} : vector<8x128xf32> to vector<8x32xf32>
    %73 = vector.extract_strided_slice %68 {offsets = [0, 96], sizes = [8, 32], strides = [1, 1]} : vector<8x128xf32> to vector<8x32xf32>
    %74 = arith.mulf %71, %53 : vector<8x32xf32>
    %75 = arith.mulf %70, %72 : vector<8x32xf32>
    %76 = arith.addf %74, %75 : vector<8x32xf32>
    %77 = math.tanh %76 : vector<8x32xf32>
    %78 = arith.mulf %73, %77 : vector<8x32xf32>
    %79 = arith.index_cast %59 : i32 to index
    %c0_26 = arith.constant 0 : index
    %80 = vector.load %arg9[%79, %c0_26] : memref<64x32xf32, #tpu.memory_space<vmem>>, vector<8x32xf32>
    tpu.vector_store %arg9[%79, %c0_26], %78 {strides = array<i32>} : memref<64x32xf32, #tpu.memory_space<vmem>>, vector<8x32xf32>,
    %c3_i32 = arith.constant 3 : i32
    %c8_i32_27 = arith.constant 8 : i32
    %81 = arith.muli %c3_i32, %c8_i32_27 : i32
    %82 = tpu.assume_multiple %81, 8 : i32
    %83 = arith.index_cast %82 : i32 to index
    %c0_28 = arith.constant 0 : index
    %84 = vector.load %arg8[%83, %c0_28] : memref<64x128xf32, #tpu.memory_space<vmem>>, vector<8x128xf32>
    %cst_29 = arith.constant dense<0.000000e+00> : vector<8x128xf32>
    %85 = tpu.matmul %78, %3, %cst_29 {dimension_numbers = #tpu.dot_dimension_numbers<[1], [0], [0], [1], [0, 0, 1, 1], [], []>} : vector<8x32xf32>, vector<32x128xf32>, vector<8x128xf32> -> vector<8x128xf32>
    %86 = arith.addf %84, %85 : vector<8x128xf32>
    %87 = arith.negf %86 : vector<8x128xf32>
    %88 = math.exp %87 : vector<8x128xf32>
    %cst_30 = arith.constant 1.000000e+00 : f32
    %89 = vector.broadcast %cst_30 : f32 to vector<8x128xf32>
    %90 = arith.addf %89, %88 : vector<8x128xf32>
    %91 = arith.divf %89, %90 : vector<8x128xf32>
    %92 = math.tanh %86 : vector<8x128xf32>
    %93 = vector.extract_strided_slice %91 {offsets = [0, 0], sizes = [8, 32], strides = [1, 1]} : vector<8x128xf32> to vector<8x32xf32>
    %94 = vector.extract_strided_slice %91 {offsets = [0, 32], sizes = [8, 32], strides = [1, 1]} : vector<8x128xf32> to vector<8x32xf32>
    %95 = vector.extract_strided_slice %92 {offsets = [0, 64], sizes = [8, 32], strides = [1, 1]} : vector<8x128xf32> to vector<8x32xf32>
    %96 = vector.extract_strided_slice %91 {offsets = [0, 96], sizes = [8, 32], strides = [1, 1]} : vector<8x128xf32> to vector<8x32xf32>
    %97 = arith.mulf %94, %76 : vector<8x32xf32>
    %98 = arith.mulf %93, %95 : vector<8x32xf32>
    %99 = arith.addf %97, %98 : vector<8x32xf32>
    %100 = math.tanh %99 : vector<8x32xf32>
    %101 = arith.mulf %96, %100 : vector<8x32xf32>
    %102 = arith.index_cast %82 : i32 to index
    %c0_31 = arith.constant 0 : index
    %103 = vector.load %arg9[%102, %c0_31] : memref<64x32xf32, #tpu.memory_space<vmem>>, vector<8x32xf32>
    tpu.vector_store %arg9[%102, %c0_31], %101 {strides = array<i32>} : memref<64x32xf32, #tpu.memory_space<vmem>>, vector<8x32xf32>,
    %c4_i32 = arith.constant 4 : i32
    %c8_i32_32 = arith.constant 8 : i32
    %104 = arith.muli %c4_i32, %c8_i32_32 : i32
    %105 = tpu.assume_multiple %104, 8 : i32
    %106 = arith.index_cast %105 : i32 to index
    %c0_33 = arith.constant 0 : index
    %107 = vector.load %arg8[%106, %c0_33] : memref<64x128xf32, #tpu.memory_space<vmem>>, vector<8x128xf32>
    %cst_34 = arith.constant dense<0.000000e+00> : vector<8x128xf32>
    %108 = tpu.matmul %101, %3, %cst_34 {dimension_numbers = #tpu.dot_dimension_numbers<[1], [0], [0], [1], [0, 0, 1, 1], [], []>} : vector<8x32xf32>, vector<32x128xf32>, vector<8x128xf32> -> vector<8x128xf32>
    %109 = arith.addf %107, %108 : vector<8x128xf32>
    %110 = arith.negf %109 : vector<8x128xf32>
    %111 = math.exp %110 : vector<8x128xf32>
    %cst_35 = arith.constant 1.000000e+00 : f32
    %112 = vector.broadcast %cst_35 : f32 to vector<8x128xf32>
    %113 = arith.addf %112, %111 : vector<8x128xf32>
    %114 = arith.divf %112, %113 : vector<8x128xf32>
    %115 = math.tanh %109 : vector<8x128xf32>
    %116 = vector.extract_strided_slice %114 {offsets = [0, 0], sizes = [8, 32], strides = [1, 1]} : vector<8x128xf32> to vector<8x32xf32>
    %117 = vector.extract_strided_slice %114 {offsets = [0, 32], sizes = [8, 32], strides = [1, 1]} : vector<8x128xf32> to vector<8x32xf32>
    %118 = vector.extract_strided_slice %115 {offsets = [0, 64], sizes = [8, 32], strides = [1, 1]} : vector<8x128xf32> to vector<8x32xf32>
    %119 = vector.extract_strided_slice %114 {offsets = [0, 96], sizes = [8, 32], strides = [1, 1]} : vector<8x128xf32> to vector<8x32xf32>
    %120 = arith.mulf %117, %99 : vector<8x32xf32>
    %121 = arith.mulf %116, %118 : vector<8x32xf32>
    %122 = arith.addf %120, %121 : vector<8x32xf32>
    %123 = math.tanh %122 : vector<8x32xf32>
    %124 = arith.mulf %119, %123 : vector<8x32xf32>
    %125 = arith.index_cast %105 : i32 to index
    %c0_36 = arith.constant 0 : index
    %126 = vector.load %arg9[%125, %c0_36] : memref<64x32xf32, #tpu.memory_space<vmem>>, vector<8x32xf32>
    tpu.vector_store %arg9[%125, %c0_36], %124 {strides = array<i32>} : memref<64x32xf32, #tpu.memory_space<vmem>>, vector<8x32xf32>,
    %c5_i32 = arith.constant 5 : i32
    %c8_i32_37 = arith.constant 8 : i32
    %127 = arith.muli %c5_i32, %c8_i32_37 : i32
    %128 = tpu.assume_multiple %127, 8 : i32
    %129 = arith.index_cast %128 : i32 to index
    %c0_38 = arith.constant 0 : index
    %130 = vector.load %arg8[%129, %c0_38] : memref<64x128xf32, #tpu.memory_space<vmem>>, vector<8x128xf32>
    %cst_39 = arith.constant dense<0.000000e+00> : vector<8x128xf32>
    %131 = tpu.matmul %124, %3, %cst_39 {dimension_numbers = #tpu.dot_dimension_numbers<[1], [0], [0], [1], [0, 0, 1, 1], [], []>} : vector<8x32xf32>, vector<32x128xf32>, vector<8x128xf32> -> vector<8x128xf32>
    %132 = arith.addf %130, %131 : vector<8x128xf32>
    %133 = arith.negf %132 : vector<8x128xf32>
    %134 = math.exp %133 : vector<8x128xf32>
    %cst_40 = arith.constant 1.000000e+00 : f32
    %135 = vector.broadcast %cst_40 : f32 to vector<8x128xf32>
    %136 = arith.addf %135, %134 : vector<8x128xf32>
    %137 = arith.divf %135, %136 : vector<8x128xf32>
    %138 = math.tanh %132 : vector<8x128xf32>
    %139 = vector.extract_strided_slice %137 {offsets = [0, 0], sizes = [8, 32], strides = [1, 1]} : vector<8x128xf32> to vector<8x32xf32>
    %140 = vector.extract_strided_slice %137 {offsets = [0, 32], sizes = [8, 32], strides = [1, 1]} : vector<8x128xf32> to vector<8x32xf32>
    %141 = vector.extract_strided_slice %138 {offsets = [0, 64], sizes = [8, 32], strides = [1, 1]} : vector<8x128xf32> to vector<8x32xf32>
    %142 = vector.extract_strided_slice %137 {offsets = [0, 96], sizes = [8, 32], strides = [1, 1]} : vector<8x128xf32> to vector<8x32xf32>
    %143 = arith.mulf %140, %122 : vector<8x32xf32>
    %144 = arith.mulf %139, %141 : vector<8x32xf32>
    %145 = arith.addf %143, %144 : vector<8x32xf32>
    %146 = math.tanh %145 : vector<8x32xf32>
    %147 = arith.mulf %142, %146 : vector<8x32xf32>
    %148 = arith.index_cast %128 : i32 to index
    %c0_41 = arith.constant 0 : index
    %149 = vector.load %arg9[%148, %c0_41] : memref<64x32xf32, #tpu.memory_space<vmem>>, vector<8x32xf32>
    tpu.vector_store %arg9[%148, %c0_41], %147 {strides = array<i32>} : memref<64x32xf32, #tpu.memory_space<vmem>>, vector<8x32xf32>,
    %c6_i32 = arith.constant 6 : i32
    %c8_i32_42 = arith.constant 8 : i32
    %150 = arith.muli %c6_i32, %c8_i32_42 : i32
    %151 = tpu.assume_multiple %150, 8 : i32
    %152 = arith.index_cast %151 : i32 to index
    %c0_43 = arith.constant 0 : index
    %153 = vector.load %arg8[%152, %c0_43] : memref<64x128xf32, #tpu.memory_space<vmem>>, vector<8x128xf32>
    %cst_44 = arith.constant dense<0.000000e+00> : vector<8x128xf32>
    %154 = tpu.matmul %147, %3, %cst_44 {dimension_numbers = #tpu.dot_dimension_numbers<[1], [0], [0], [1], [0, 0, 1, 1], [], []>} : vector<8x32xf32>, vector<32x128xf32>, vector<8x128xf32> -> vector<8x128xf32>
    %155 = arith.addf %153, %154 : vector<8x128xf32>
    %156 = arith.negf %155 : vector<8x128xf32>
    %157 = math.exp %156 : vector<8x128xf32>
    %cst_45 = arith.constant 1.000000e+00 : f32
    %158 = vector.broadcast %cst_45 : f32 to vector<8x128xf32>
    %159 = arith.addf %158, %157 : vector<8x128xf32>
    %160 = arith.divf %158, %159 : vector<8x128xf32>
    %161 = math.tanh %155 : vector<8x128xf32>
    %162 = vector.extract_strided_slice %160 {offsets = [0, 0], sizes = [8, 32], strides = [1, 1]} : vector<8x128xf32> to vector<8x32xf32>
    %163 = vector.extract_strided_slice %160 {offsets = [0, 32], sizes = [8, 32], strides = [1, 1]} : vector<8x128xf32> to vector<8x32xf32>
    %164 = vector.extract_strided_slice %161 {offsets = [0, 64], sizes = [8, 32], strides = [1, 1]} : vector<8x128xf32> to vector<8x32xf32>
    %165 = vector.extract_strided_slice %160 {offsets = [0, 96], sizes = [8, 32], strides = [1, 1]} : vector<8x128xf32> to vector<8x32xf32>
    %166 = arith.mulf %163, %145 : vector<8x32xf32>
    %167 = arith.mulf %162, %164 : vector<8x32xf32>
    %168 = arith.addf %166, %167 : vector<8x32xf32>
    %169 = math.tanh %168 : vector<8x32xf32>
    %170 = arith.mulf %165, %169 : vector<8x32xf32>
    %171 = arith.index_cast %151 : i32 to index
    %c0_46 = arith.constant 0 : index
    %172 = vector.load %arg9[%171, %c0_46] : memref<64x32xf32, #tpu.memory_space<vmem>>, vector<8x32xf32>
    tpu.vector_store %arg9[%171, %c0_46], %170 {strides = array<i32>} : memref<64x32xf32, #tpu.memory_space<vmem>>, vector<8x32xf32>,
    %c7_i32 = arith.constant 7 : i32
    %c8_i32_47 = arith.constant 8 : i32
    %173 = arith.muli %c7_i32, %c8_i32_47 : i32
    %174 = tpu.assume_multiple %173, 8 : i32
    %175 = arith.index_cast %174 : i32 to index
    %c0_48 = arith.constant 0 : index
    %176 = vector.load %arg8[%175, %c0_48] : memref<64x128xf32, #tpu.memory_space<vmem>>, vector<8x128xf32>
    %cst_49 = arith.constant dense<0.000000e+00> : vector<8x128xf32>
    %177 = tpu.matmul %170, %3, %cst_49 {dimension_numbers = #tpu.dot_dimension_numbers<[1], [0], [0], [1], [0, 0, 1, 1], [], []>} : vector<8x32xf32>, vector<32x128xf32>, vector<8x128xf32> -> vector<8x128xf32>
    %178 = arith.addf %176, %177 : vector<8x128xf32>
    %179 = arith.negf %178 : vector<8x128xf32>
    %180 = math.exp %179 : vector<8x128xf32>
    %cst_50 = arith.constant 1.000000e+00 : f32
    %181 = vector.broadcast %cst_50 : f32 to vector<8x128xf32>
    %182 = arith.addf %181, %180 : vector<8x128xf32>
    %183 = arith.divf %181, %182 : vector<8x128xf32>
    %184 = math.tanh %178 : vector<8x128xf32>
    %185 = vector.extract_strided_slice %183 {offsets = [0, 0], sizes = [8, 32], strides = [1, 1]} : vector<8x128xf32> to vector<8x32xf32>
    %186 = vector.extract_strided_slice %183 {offsets = [0, 32], sizes = [8, 32], strides = [1, 1]} : vector<8x128xf32> to vector<8x32xf32>
    %187 = vector.extract_strided_slice %184 {offsets = [0, 64], sizes = [8, 32], strides = [1, 1]} : vector<8x128xf32> to vector<8x32xf32>
    %188 = vector.extract_strided_slice %183 {offsets = [0, 96], sizes = [8, 32], strides = [1, 1]} : vector<8x128xf32> to vector<8x32xf32>
    %189 = arith.mulf %186, %168 : vector<8x32xf32>
    %190 = arith.mulf %185, %187 : vector<8x32xf32>
    %191 = arith.addf %189, %190 : vector<8x32xf32>
    %192 = math.tanh %191 : vector<8x32xf32>
    %193 = arith.mulf %188, %192 : vector<8x32xf32>
    %194 = arith.index_cast %174 : i32 to index
    %c0_51 = arith.constant 0 : index
    %195 = vector.load %arg9[%194, %c0_51] : memref<64x32xf32, #tpu.memory_space<vmem>>, vector<8x32xf32>
    tpu.vector_store %arg9[%194, %c0_51], %193 {strides = array<i32>} : memref<64x32xf32, #tpu.memory_space<vmem>>, vector<8x32xf32>,
    %c8_i32_52 = arith.constant 8 : i32
    %c1 = arith.constant 1 : index
    %c0_53 = arith.constant 0 : index
    %c0_54 = arith.constant 0 : index
    %196 = vector.load %arg2[%c1, %c0_53, %c0_54] : memref<2x32x128xf32, #tpu.memory_space<vmem>>, vector<1x32x128xf32>
    %197 = vector.shape_cast %196 : vector<1x32x128xf32> to vector<32x128xf32>
    %c1_55 = arith.constant 1 : index
    %c0_56 = arith.constant 0 : index
    %c0_57 = arith.constant 0 : index
    %198 = vector.load %arg3[%c1_55, %c0_56, %c0_57] : memref<2x32x128xf32, #tpu.memory_space<vmem>>, vector<1x32x128xf32>
    %199 = vector.shape_cast %198 : vector<1x32x128xf32> to vector<32x128xf32>
    %c1_58 = arith.constant 1 : index
    %c0_59 = arith.constant 0 : index
    %c0_60 = arith.constant 0 : index
    %200 = vector.load %arg4[%c1_58, %c0_59, %c0_60] : memref<2x1x128xf32, #tpu.memory_space<vmem>>, vector<1x1x128xf32>
    %201 = vector.shape_cast %200 : vector<1x1x128xf32> to vector<1x128xf32>
    %c0_61 = arith.constant 0 : index
    %c0_62 = arith.constant 0 : index
    %202 = vector.load %arg9[%c0_61, %c0_62] : memref<64x32xf32, #tpu.memory_space<vmem>>, vector<64x32xf32>
    %cst_63 = arith.constant dense<0.000000e+00> : vector<64x128xf32>
    %203 = tpu.matmul %202, %197, %cst_63 {dimension_numbers = #tpu.dot_dimension_numbers<[1], [0], [0], [1], [0, 0, 1, 1], [], []>} : vector<64x32xf32>, vector<32x128xf32>, vector<64x128xf32> -> vector<64x128xf32>
    %204 = vector.broadcast %201 : vector<1x128xf32> to vector<64x128xf32>
    %205 = arith.addf %203, %204 : vector<64x128xf32>
    %c0_64 = arith.constant 0 : index
    %c0_65 = arith.constant 0 : index
    %206 = vector.load %arg8[%c0_64, %c0_65] : memref<64x128xf32, #tpu.memory_space<vmem>>, vector<64x128xf32>
    tpu.vector_store %arg8[%c0_64, %c0_65], %205 {strides = array<i32>} : memref<64x128xf32, #tpu.memory_space<vmem>>, vector<64x128xf32>,
    %cst_66 = arith.constant 0.000000e+00 : f32
    %207 = vector.broadcast %cst_66 : f32 to vector<8x32xf32>
    %c0_i32_67 = arith.constant 0 : i32
    %c8_i32_68 = arith.constant 8 : i32
    %208 = arith.muli %c0_i32_67, %c8_i32_68 : i32
    %209 = tpu.assume_multiple %208, 8 : i32
    %210 = arith.index_cast %209 : i32 to index
    %c0_69 = arith.constant 0 : index
    %211 = vector.load %arg8[%210, %c0_69] : memref<64x128xf32, #tpu.memory_space<vmem>>, vector<8x128xf32>
    %cst_70 = arith.constant dense<0.000000e+00> : vector<8x128xf32>
    %212 = tpu.matmul %207, %199, %cst_70 {dimension_numbers = #tpu.dot_dimension_numbers<[1], [0], [0], [1], [0, 0, 1, 1], [], []>} : vector<8x32xf32>, vector<32x128xf32>, vector<8x128xf32> -> vector<8x128xf32>
    %213 = arith.addf %211, %212 : vector<8x128xf32>
    %214 = arith.negf %213 : vector<8x128xf32>
    %215 = math.exp %214 : vector<8x128xf32>
    %cst_71 = arith.constant 1.000000e+00 : f32
    %216 = vector.broadcast %cst_71 : f32 to vector<8x128xf32>
    %217 = arith.addf %216, %215 : vector<8x128xf32>
    %218 = arith.divf %216, %217 : vector<8x128xf32>
    %219 = math.tanh %213 : vector<8x128xf32>
    %220 = vector.extract_strided_slice %218 {offsets = [0, 0], sizes = [8, 32], strides = [1, 1]} : vector<8x128xf32> to vector<8x32xf32>
    %221 = vector.extract_strided_slice %218 {offsets = [0, 32], sizes = [8, 32], strides = [1, 1]} : vector<8x128xf32> to vector<8x32xf32>
    %222 = vector.extract_strided_slice %219 {offsets = [0, 64], sizes = [8, 32], strides = [1, 1]} : vector<8x128xf32> to vector<8x32xf32>
    %223 = vector.extract_strided_slice %218 {offsets = [0, 96], sizes = [8, 32], strides = [1, 1]} : vector<8x128xf32> to vector<8x32xf32>
    %224 = arith.mulf %221, %207 : vector<8x32xf32>
    %225 = arith.mulf %220, %222 : vector<8x32xf32>
    %226 = arith.addf %224, %225 : vector<8x32xf32>
    %227 = math.tanh %226 : vector<8x32xf32>
    %228 = arith.mulf %223, %227 : vector<8x32xf32>
    %229 = arith.index_cast %209 : i32 to index
    %c0_72 = arith.constant 0 : index
    %230 = vector.load %arg9[%229, %c0_72] : memref<64x32xf32, #tpu.memory_space<vmem>>, vector<8x32xf32>
    tpu.vector_store %arg9[%229, %c0_72], %228 {strides = array<i32>} : memref<64x32xf32, #tpu.memory_space<vmem>>, vector<8x32xf32>,
    %c1_i32_73 = arith.constant 1 : i32
    %c8_i32_74 = arith.constant 8 : i32
    %231 = arith.muli %c1_i32_73, %c8_i32_74 : i32
    %232 = tpu.assume_multiple %231, 8 : i32
    %233 = arith.index_cast %232 : i32 to index
    %c0_75 = arith.constant 0 : index
    %234 = vector.load %arg8[%233, %c0_75] : memref<64x128xf32, #tpu.memory_space<vmem>>, vector<8x128xf32>
    %cst_76 = arith.constant dense<0.000000e+00> : vector<8x128xf32>
    %235 = tpu.matmul %228, %199, %cst_76 {dimension_numbers = #tpu.dot_dimension_numbers<[1], [0], [0], [1], [0, 0, 1, 1], [], []>} : vector<8x32xf32>, vector<32x128xf32>, vector<8x128xf32> -> vector<8x128xf32>
    %236 = arith.addf %234, %235 : vector<8x128xf32>
    %237 = arith.negf %236 : vector<8x128xf32>
    %238 = math.exp %237 : vector<8x128xf32>
    %cst_77 = arith.constant 1.000000e+00 : f32
    %239 = vector.broadcast %cst_77 : f32 to vector<8x128xf32>
    %240 = arith.addf %239, %238 : vector<8x128xf32>
    %241 = arith.divf %239, %240 : vector<8x128xf32>
    %242 = math.tanh %236 : vector<8x128xf32>
    %243 = vector.extract_strided_slice %241 {offsets = [0, 0], sizes = [8, 32], strides = [1, 1]} : vector<8x128xf32> to vector<8x32xf32>
    %244 = vector.extract_strided_slice %241 {offsets = [0, 32], sizes = [8, 32], strides = [1, 1]} : vector<8x128xf32> to vector<8x32xf32>
    %245 = vector.extract_strided_slice %242 {offsets = [0, 64], sizes = [8, 32], strides = [1, 1]} : vector<8x128xf32> to vector<8x32xf32>
    %246 = vector.extract_strided_slice %241 {offsets = [0, 96], sizes = [8, 32], strides = [1, 1]} : vector<8x128xf32> to vector<8x32xf32>
    %247 = arith.mulf %244, %226 : vector<8x32xf32>
    %248 = arith.mulf %243, %245 : vector<8x32xf32>
    %249 = arith.addf %247, %248 : vector<8x32xf32>
    %250 = math.tanh %249 : vector<8x32xf32>
    %251 = arith.mulf %246, %250 : vector<8x32xf32>
    %252 = arith.index_cast %232 : i32 to index
    %c0_78 = arith.constant 0 : index
    %253 = vector.load %arg9[%252, %c0_78] : memref<64x32xf32, #tpu.memory_space<vmem>>, vector<8x32xf32>
    tpu.vector_store %arg9[%252, %c0_78], %251 {strides = array<i32>} : memref<64x32xf32, #tpu.memory_space<vmem>>, vector<8x32xf32>,
    %c2_i32_79 = arith.constant 2 : i32
    %c8_i32_80 = arith.constant 8 : i32
    %254 = arith.muli %c2_i32_79, %c8_i32_80 : i32
    %255 = tpu.assume_multiple %254, 8 : i32
    %256 = arith.index_cast %255 : i32 to index
    %c0_81 = arith.constant 0 : index
    %257 = vector.load %arg8[%256, %c0_81] : memref<64x128xf32, #tpu.memory_space<vmem>>, vector<8x128xf32>
    %cst_82 = arith.constant dense<0.000000e+00> : vector<8x128xf32>
    %258 = tpu.matmul %251, %199, %cst_82 {dimension_numbers = #tpu.dot_dimension_numbers<[1], [0], [0], [1], [0, 0, 1, 1], [], []>} : vector<8x32xf32>, vector<32x128xf32>, vector<8x128xf32> -> vector<8x128xf32>
    %259 = arith.addf %257, %258 : vector<8x128xf32>
    %260 = arith.negf %259 : vector<8x128xf32>
    %261 = math.exp %260 : vector<8x128xf32>
    %cst_83 = arith.constant 1.000000e+00 : f32
    %262 = vector.broadcast %cst_83 : f32 to vector<8x128xf32>
    %263 = arith.addf %262, %261 : vector<8x128xf32>
    %264 = arith.divf %262, %263 : vector<8x128xf32>
    %265 = math.tanh %259 : vector<8x128xf32>
    %266 = vector.extract_strided_slice %264 {offsets = [0, 0], sizes = [8, 32], strides = [1, 1]} : vector<8x128xf32> to vector<8x32xf32>
    %267 = vector.extract_strided_slice %264 {offsets = [0, 32], sizes = [8, 32], strides = [1, 1]} : vector<8x128xf32> to vector<8x32xf32>
    %268 = vector.extract_strided_slice %265 {offsets = [0, 64], sizes = [8, 32], strides = [1, 1]} : vector<8x128xf32> to vector<8x32xf32>
    %269 = vector.extract_strided_slice %264 {offsets = [0, 96], sizes = [8, 32], strides = [1, 1]} : vector<8x128xf32> to vector<8x32xf32>
    %270 = arith.mulf %267, %249 : vector<8x32xf32>
    %271 = arith.mulf %266, %268 : vector<8x32xf32>
    %272 = arith.addf %270, %271 : vector<8x32xf32>
    %273 = math.tanh %272 : vector<8x32xf32>
    %274 = arith.mulf %269, %273 : vector<8x32xf32>
    %275 = arith.index_cast %255 : i32 to index
    %c0_84 = arith.constant 0 : index
    %276 = vector.load %arg9[%275, %c0_84] : memref<64x32xf32, #tpu.memory_space<vmem>>, vector<8x32xf32>
    tpu.vector_store %arg9[%275, %c0_84], %274 {strides = array<i32>} : memref<64x32xf32, #tpu.memory_space<vmem>>, vector<8x32xf32>,
    %c3_i32_85 = arith.constant 3 : i32
    %c8_i32_86 = arith.constant 8 : i32
    %277 = arith.muli %c3_i32_85, %c8_i32_86 : i32
    %278 = tpu.assume_multiple %277, 8 : i32
    %279 = arith.index_cast %278 : i32 to index
    %c0_87 = arith.constant 0 : index
    %280 = vector.load %arg8[%279, %c0_87] : memref<64x128xf32, #tpu.memory_space<vmem>>, vector<8x128xf32>
    %cst_88 = arith.constant dense<0.000000e+00> : vector<8x128xf32>
    %281 = tpu.matmul %274, %199, %cst_88 {dimension_numbers = #tpu.dot_dimension_numbers<[1], [0], [0], [1], [0, 0, 1, 1], [], []>} : vector<8x32xf32>, vector<32x128xf32>, vector<8x128xf32> -> vector<8x128xf32>
    %282 = arith.addf %280, %281 : vector<8x128xf32>
    %283 = arith.negf %282 : vector<8x128xf32>
    %284 = math.exp %283 : vector<8x128xf32>
    %cst_89 = arith.constant 1.000000e+00 : f32
    %285 = vector.broadcast %cst_89 : f32 to vector<8x128xf32>
    %286 = arith.addf %285, %284 : vector<8x128xf32>
    %287 = arith.divf %285, %286 : vector<8x128xf32>
    %288 = math.tanh %282 : vector<8x128xf32>
    %289 = vector.extract_strided_slice %287 {offsets = [0, 0], sizes = [8, 32], strides = [1, 1]} : vector<8x128xf32> to vector<8x32xf32>
    %290 = vector.extract_strided_slice %287 {offsets = [0, 32], sizes = [8, 32], strides = [1, 1]} : vector<8x128xf32> to vector<8x32xf32>
    %291 = vector.extract_strided_slice %288 {offsets = [0, 64], sizes = [8, 32], strides = [1, 1]} : vector<8x128xf32> to vector<8x32xf32>
    %292 = vector.extract_strided_slice %287 {offsets = [0, 96], sizes = [8, 32], strides = [1, 1]} : vector<8x128xf32> to vector<8x32xf32>
    %293 = arith.mulf %290, %272 : vector<8x32xf32>
    %294 = arith.mulf %289, %291 : vector<8x32xf32>
    %295 = arith.addf %293, %294 : vector<8x32xf32>
    %296 = math.tanh %295 : vector<8x32xf32>
    %297 = arith.mulf %292, %296 : vector<8x32xf32>
    %298 = arith.index_cast %278 : i32 to index
    %c0_90 = arith.constant 0 : index
    %299 = vector.load %arg9[%298, %c0_90] : memref<64x32xf32, #tpu.memory_space<vmem>>, vector<8x32xf32>
    tpu.vector_store %arg9[%298, %c0_90], %297 {strides = array<i32>} : memref<64x32xf32, #tpu.memory_space<vmem>>, vector<8x32xf32>,
    %c4_i32_91 = arith.constant 4 : i32
    %c8_i32_92 = arith.constant 8 : i32
    %300 = arith.muli %c4_i32_91, %c8_i32_92 : i32
    %301 = tpu.assume_multiple %300, 8 : i32
    %302 = arith.index_cast %301 : i32 to index
    %c0_93 = arith.constant 0 : index
    %303 = vector.load %arg8[%302, %c0_93] : memref<64x128xf32, #tpu.memory_space<vmem>>, vector<8x128xf32>
    %cst_94 = arith.constant dense<0.000000e+00> : vector<8x128xf32>
    %304 = tpu.matmul %297, %199, %cst_94 {dimension_numbers = #tpu.dot_dimension_numbers<[1], [0], [0], [1], [0, 0, 1, 1], [], []>} : vector<8x32xf32>, vector<32x128xf32>, vector<8x128xf32> -> vector<8x128xf32>
    %305 = arith.addf %303, %304 : vector<8x128xf32>
    %306 = arith.negf %305 : vector<8x128xf32>
    %307 = math.exp %306 : vector<8x128xf32>
    %cst_95 = arith.constant 1.000000e+00 : f32
    %308 = vector.broadcast %cst_95 : f32 to vector<8x128xf32>
    %309 = arith.addf %308, %307 : vector<8x128xf32>
    %310 = arith.divf %308, %309 : vector<8x128xf32>
    %311 = math.tanh %305 : vector<8x128xf32>
    %312 = vector.extract_strided_slice %310 {offsets = [0, 0], sizes = [8, 32], strides = [1, 1]} : vector<8x128xf32> to vector<8x32xf32>
    %313 = vector.extract_strided_slice %310 {offsets = [0, 32], sizes = [8, 32], strides = [1, 1]} : vector<8x128xf32> to vector<8x32xf32>
    %314 = vector.extract_strided_slice %311 {offsets = [0, 64], sizes = [8, 32], strides = [1, 1]} : vector<8x128xf32> to vector<8x32xf32>
    %315 = vector.extract_strided_slice %310 {offsets = [0, 96], sizes = [8, 32], strides = [1, 1]} : vector<8x128xf32> to vector<8x32xf32>
    %316 = arith.mulf %313, %295 : vector<8x32xf32>
    %317 = arith.mulf %312, %314 : vector<8x32xf32>
    %318 = arith.addf %316, %317 : vector<8x32xf32>
    %319 = math.tanh %318 : vector<8x32xf32>
    %320 = arith.mulf %315, %319 : vector<8x32xf32>
    %321 = arith.index_cast %301 : i32 to index
    %c0_96 = arith.constant 0 : index
    %322 = vector.load %arg9[%321, %c0_96] : memref<64x32xf32, #tpu.memory_space<vmem>>, vector<8x32xf32>
    tpu.vector_store %arg9[%321, %c0_96], %320 {strides = array<i32>} : memref<64x32xf32, #tpu.memory_space<vmem>>, vector<8x32xf32>,
    %c5_i32_97 = arith.constant 5 : i32
    %c8_i32_98 = arith.constant 8 : i32
    %323 = arith.muli %c5_i32_97, %c8_i32_98 : i32
    %324 = tpu.assume_multiple %323, 8 : i32
    %325 = arith.index_cast %324 : i32 to index
    %c0_99 = arith.constant 0 : index
    %326 = vector.load %arg8[%325, %c0_99] : memref<64x128xf32, #tpu.memory_space<vmem>>, vector<8x128xf32>
    %cst_100 = arith.constant dense<0.000000e+00> : vector<8x128xf32>
    %327 = tpu.matmul %320, %199, %cst_100 {dimension_numbers = #tpu.dot_dimension_numbers<[1], [0], [0], [1], [0, 0, 1, 1], [], []>} : vector<8x32xf32>, vector<32x128xf32>, vector<8x128xf32> -> vector<8x128xf32>
    %328 = arith.addf %326, %327 : vector<8x128xf32>
    %329 = arith.negf %328 : vector<8x128xf32>
    %330 = math.exp %329 : vector<8x128xf32>
    %cst_101 = arith.constant 1.000000e+00 : f32
    %331 = vector.broadcast %cst_101 : f32 to vector<8x128xf32>
    %332 = arith.addf %331, %330 : vector<8x128xf32>
    %333 = arith.divf %331, %332 : vector<8x128xf32>
    %334 = math.tanh %328 : vector<8x128xf32>
    %335 = vector.extract_strided_slice %333 {offsets = [0, 0], sizes = [8, 32], strides = [1, 1]} : vector<8x128xf32> to vector<8x32xf32>
    %336 = vector.extract_strided_slice %333 {offsets = [0, 32], sizes = [8, 32], strides = [1, 1]} : vector<8x128xf32> to vector<8x32xf32>
    %337 = vector.extract_strided_slice %334 {offsets = [0, 64], sizes = [8, 32], strides = [1, 1]} : vector<8x128xf32> to vector<8x32xf32>
    %338 = vector.extract_strided_slice %333 {offsets = [0, 96], sizes = [8, 32], strides = [1, 1]} : vector<8x128xf32> to vector<8x32xf32>
    %339 = arith.mulf %336, %318 : vector<8x32xf32>
    %340 = arith.mulf %335, %337 : vector<8x32xf32>
    %341 = arith.addf %339, %340 : vector<8x32xf32>
    %342 = math.tanh %341 : vector<8x32xf32>
    %343 = arith.mulf %338, %342 : vector<8x32xf32>
    %344 = arith.index_cast %324 : i32 to index
    %c0_102 = arith.constant 0 : index
    %345 = vector.load %arg9[%344, %c0_102] : memref<64x32xf32, #tpu.memory_space<vmem>>, vector<8x32xf32>
    tpu.vector_store %arg9[%344, %c0_102], %343 {strides = array<i32>} : memref<64x32xf32, #tpu.memory_space<vmem>>, vector<8x32xf32>,
    %c6_i32_103 = arith.constant 6 : i32
    %c8_i32_104 = arith.constant 8 : i32
    %346 = arith.muli %c6_i32_103, %c8_i32_104 : i32
    %347 = tpu.assume_multiple %346, 8 : i32
    %348 = arith.index_cast %347 : i32 to index
    %c0_105 = arith.constant 0 : index
    %349 = vector.load %arg8[%348, %c0_105] : memref<64x128xf32, #tpu.memory_space<vmem>>, vector<8x128xf32>
    %cst_106 = arith.constant dense<0.000000e+00> : vector<8x128xf32>
    %350 = tpu.matmul %343, %199, %cst_106 {dimension_numbers = #tpu.dot_dimension_numbers<[1], [0], [0], [1], [0, 0, 1, 1], [], []>} : vector<8x32xf32>, vector<32x128xf32>, vector<8x128xf32> -> vector<8x128xf32>
    %351 = arith.addf %349, %350 : vector<8x128xf32>
    %352 = arith.negf %351 : vector<8x128xf32>
    %353 = math.exp %352 : vector<8x128xf32>
    %cst_107 = arith.constant 1.000000e+00 : f32
    %354 = vector.broadcast %cst_107 : f32 to vector<8x128xf32>
    %355 = arith.addf %354, %353 : vector<8x128xf32>
    %356 = arith.divf %354, %355 : vector<8x128xf32>
    %357 = math.tanh %351 : vector<8x128xf32>
    %358 = vector.extract_strided_slice %356 {offsets = [0, 0], sizes = [8, 32], strides = [1, 1]} : vector<8x128xf32> to vector<8x32xf32>
    %359 = vector.extract_strided_slice %356 {offsets = [0, 32], sizes = [8, 32], strides = [1, 1]} : vector<8x128xf32> to vector<8x32xf32>
    %360 = vector.extract_strided_slice %357 {offsets = [0, 64], sizes = [8, 32], strides = [1, 1]} : vector<8x128xf32> to vector<8x32xf32>
    %361 = vector.extract_strided_slice %356 {offsets = [0, 96], sizes = [8, 32], strides = [1, 1]} : vector<8x128xf32> to vector<8x32xf32>
    %362 = arith.mulf %359, %341 : vector<8x32xf32>
    %363 = arith.mulf %358, %360 : vector<8x32xf32>
    %364 = arith.addf %362, %363 : vector<8x32xf32>
    %365 = math.tanh %364 : vector<8x32xf32>
    %366 = arith.mulf %361, %365 : vector<8x32xf32>
    %367 = arith.index_cast %347 : i32 to index
    %c0_108 = arith.constant 0 : index
    %368 = vector.load %arg9[%367, %c0_108] : memref<64x32xf32, #tpu.memory_space<vmem>>, vector<8x32xf32>
    tpu.vector_store %arg9[%367, %c0_108], %366 {strides = array<i32>} : memref<64x32xf32, #tpu.memory_space<vmem>>, vector<8x32xf32>,
    %c7_i32_109 = arith.constant 7 : i32
    %c8_i32_110 = arith.constant 8 : i32
    %369 = arith.muli %c7_i32_109, %c8_i32_110 : i32
    %370 = tpu.assume_multiple %369, 8 : i32
    %371 = arith.index_cast %370 : i32 to index
    %c0_111 = arith.constant 0 : index
    %372 = vector.load %arg8[%371, %c0_111] : memref<64x128xf32, #tpu.memory_space<vmem>>, vector<8x128xf32>
    %cst_112 = arith.constant dense<0.000000e+00> : vector<8x128xf32>
    %373 = tpu.matmul %366, %199, %cst_112 {dimension_numbers = #tpu.dot_dimension_numbers<[1], [0], [0], [1], [0, 0, 1, 1], [], []>} : vector<8x32xf32>, vector<32x128xf32>, vector<8x128xf32> -> vector<8x128xf32>
    %374 = arith.addf %372, %373 : vector<8x128xf32>
    %375 = arith.negf %374 : vector<8x128xf32>
    %376 = math.exp %375 : vector<8x128xf32>
    %cst_113 = arith.constant 1.000000e+00 : f32
    %377 = vector.broadcast %cst_113 : f32 to vector<8x128xf32>
    %378 = arith.addf %377, %376 : vector<8x128xf32>
    %379 = arith.divf %377, %378 : vector<8x128xf32>
    %380 = math.tanh %374 : vector<8x128xf32>
    %381 = vector.extract_strided_slice %379 {offsets = [0, 0], sizes = [8, 32], strides = [1, 1]} : vector<8x128xf32> to vector<8x32xf32>
    %382 = vector.extract_strided_slice %379 {offsets = [0, 32], sizes = [8, 32], strides = [1, 1]} : vector<8x128xf32> to vector<8x32xf32>
    %383 = vector.extract_strided_slice %380 {offsets = [0, 64], sizes = [8, 32], strides = [1, 1]} : vector<8x128xf32> to vector<8x32xf32>
    %384 = vector.extract_strided_slice %379 {offsets = [0, 96], sizes = [8, 32], strides = [1, 1]} : vector<8x128xf32> to vector<8x32xf32>
    %385 = arith.mulf %382, %364 : vector<8x32xf32>
    %386 = arith.mulf %381, %383 : vector<8x32xf32>
    %387 = arith.addf %385, %386 : vector<8x32xf32>
    %388 = math.tanh %387 : vector<8x32xf32>
    %389 = arith.mulf %384, %388 : vector<8x32xf32>
    %390 = arith.index_cast %370 : i32 to index
    %c0_114 = arith.constant 0 : index
    %391 = vector.load %arg9[%390, %c0_114] : memref<64x32xf32, #tpu.memory_space<vmem>>, vector<8x32xf32>
    tpu.vector_store %arg9[%390, %c0_114], %389 {strides = array<i32>} : memref<64x32xf32, #tpu.memory_space<vmem>>, vector<8x32xf32>,
    %c8_i32_115 = arith.constant 8 : i32
    %c0_116 = arith.constant 0 : index
    %c0_117 = arith.constant 0 : index
    %392 = vector.load %arg9[%c0_116, %c0_117] : memref<64x32xf32, #tpu.memory_space<vmem>>, vector<64x32xf32>
    %c0_118 = arith.constant 0 : index
    %c0_119 = arith.constant 0 : index
    %393 = vector.load %arg5[%c0_118, %c0_119] : memref<32x4xf32, #tpu.memory_space<vmem>>, vector<32x4xf32>
    %cst_120 = arith.constant dense<0.000000e+00> : vector<64x4xf32>
    %394 = tpu.matmul %392, %393, %cst_120 {dimension_numbers = #tpu.dot_dimension_numbers<[1], [0], [0], [1], [0, 0, 1, 1], [], []>} : vector<64x32xf32>, vector<32x4xf32>, vector<64x4xf32> -> vector<64x4xf32>
    %c0_121 = arith.constant 0 : index
    %c0_122 = arith.constant 0 : index
    %395 = vector.load %arg6[%c0_121, %c0_122] : memref<1x4xf32, #tpu.memory_space<vmem>>, vector<1x4xf32>
    %396 = vector.broadcast %395 : vector<1x4xf32> to vector<64x4xf32>
    %397 = arith.addf %394, %396 : vector<64x4xf32>
    %c0_123 = arith.constant 0 : index
    %c0_124 = arith.constant 0 : index
    %398 = vector.load %arg7[%c0_123, %c0_124] : memref<64x4xf32, #tpu.memory_space<vmem>>, vector<64x4xf32>
    tpu.vector_store %arg7[%c0_123, %c0_124], %397 {strides = array<i32>} : memref<64x4xf32, #tpu.memory_space<vmem>>, vector<64x4xf32>,
    return
  }
  func.func @transform_0(%arg0: i32) -> (i32, i32) {
    %c0_i32 = arith.constant 0 : i32
    %c0_i32_0 = arith.constant 0 : i32
    %c0_i32_1 = arith.constant 0 : i32
    return %c0_i32, %c0_i32_0 : i32, i32
  }
  func.func @transform_1(%arg0: i32) -> (i32, i32, i32) {
    %c0_i32 = arith.constant 0 : i32
    %c0_i32_0 = arith.constant 0 : i32
    %c0_i32_1 = arith.constant 0 : i32
    %c0_i32_2 = arith.constant 0 : i32
    return %c0_i32, %c0_i32_0, %c0_i32_1 : i32, i32, i32
  }
  func.func @transform_2(%arg0: i32) -> (i32, i32, i32) {
    %c0_i32 = arith.constant 0 : i32
    %c0_i32_0 = arith.constant 0 : i32
    %c0_i32_1 = arith.constant 0 : i32
    %c0_i32_2 = arith.constant 0 : i32
    return %c0_i32, %c0_i32_0, %c0_i32_1 : i32, i32, i32
  }
  func.func @transform_3(%arg0: i32) -> (i32, i32, i32) {
    %c0_i32 = arith.constant 0 : i32
    %c0_i32_0 = arith.constant 0 : i32
    %c0_i32_1 = arith.constant 0 : i32
    %c0_i32_2 = arith.constant 0 : i32
    return %c0_i32, %c0_i32_0, %c0_i32_1 : i32, i32, i32
  }
  func.func @transform_4(%arg0: i32) -> (i32, i32) {
    %c0_i32 = arith.constant 0 : i32
    %c0_i32_0 = arith.constant 0 : i32
    %c0_i32_1 = arith.constant 0 : i32
    return %c0_i32, %c0_i32_0 : i32, i32
  }
  func.func @transform_5(%arg0: i32) -> (i32, i32) {
    %c0_i32 = arith.constant 0 : i32
    %c0_i32_0 = arith.constant 0 : i32
    %c0_i32_1 = arith.constant 0 : i32
    return %c0_i32, %c0_i32_0 : i32, i32
  }
  func.func @transform_6(%arg0: i32) -> (i32, i32) {
    %c0_i32 = arith.constant 0 : i32
    %c0_i32_0 = arith.constant 0 : i32
    %c0_i32_1 = arith.constant 0 : i32
    return %c0_i32, %c0_i32_0 : i32, i32
  }
}

</mosaic_0001>

<llo_original>
// kernel: tpu_custom_call.1
$region0: #{tpu_custom_call.1}
  #allocation0 [shape = 'u32[]', space=smem, size = 0x4, offset = 0x4, fixed_abs, tag = 'smem constant byte address 0x4 - core index']
  #allocation1 [shape = 'u32[144,128]{1,0:T(1,128)}', space=vmem, size = 0x12000, scoped, tag = 'internal scratch']
  #allocation2 [shape = 'f32[64,128]{1,0:T(8,128)}', space=vmem, size = 0x8000, scoped, tag = 'scratch operand']
  #allocation3 [shape = 'f32[64,32]{1,0:T(8,128)}', space=vmem, size = 0x8000, scoped, tag = 'scratch operand']
  %s0 = inlined_call_operand.vmem [shape: f32[64,32], index: 0, kind: input, shape index: {}]
  %s1 = inlined_call_operand.vmem [shape: f32[2,32,128], index: 1, kind: input, shape index: {}]
  %s2 = inlined_call_operand.vmem [shape: f32[2,32,128], index: 2, kind: input, shape index: {}]
  %s3 = inlined_call_operand.vmem [shape: f32[2,1,128], index: 3, kind: input, shape index: {}]
  %s4 = inlined_call_operand.vmem [shape: f32[32,4], index: 4, kind: input, shape index: {}]
  %s5 = inlined_call_operand.vmem [shape: f32[1,4], index: 5, kind: input, shape index: {}]
  %s6 = inlined_call_operand.vmem [shape: f32[64,4], index: 6, kind: output, shape index: {}]
  %s7 = sld [smem:[#allocation0]]
  $region34: #{tpu_custom_call.1} parent=0
    _
  %s9 = ssub.s32 1, %s7
  %s10 = scalar_select 0, %s9, %s7
  // Predicated region
  $region2: #{tpu_custom_call.1} parent=0 // pred_check
    _
  $region3: #{tpu_custom_call.1} parent=0 // pred_check_branch
    %12 = sbr.rel (0) target = $region5
  $region4: #{tpu_custom_call.1} parent=0 // pred_region
    _
  $region5: #{tpu_custom_call.1} parent=0 // pred_fallthru
    _
  // Predicated region
  $region6: #{tpu_custom_call.1} parent=0 // pred_check
    _
  $region7: #{tpu_custom_call.1} parent=0 // pred_check_branch
    %14 = sbr.rel (0) target = $region9
  $region8: #{tpu_custom_call.1} parent=0 // pred_region
    _
  $region9: #{tpu_custom_call.1} parent=0 // pred_fallthru
    _
  // Predicated region
  $region10: #{tpu_custom_call.1} parent=0 // pred_check
    _
  $region11: #{tpu_custom_call.1} parent=0 // pred_check_branch
    %16 = sbr.rel (0) target = $region13
  $region12: #{tpu_custom_call.1} parent=0 // pred_region
    _
  $region13: #{tpu_custom_call.1} parent=0 // pred_fallthru
    _
  // Predicated region
  $region14: #{tpu_custom_call.1} parent=0 // pred_check
    _
  $region15: #{tpu_custom_call.1} parent=0 // pred_check_branch
    %18 = sbr.rel (0) target = $region17
  $region16: #{tpu_custom_call.1} parent=0 // pred_region
    _
  $region17: #{tpu_custom_call.1} parent=0 // pred_fallthru
    _
  // Predicated region
  $region18: #{tpu_custom_call.1} parent=0 // pred_check
    _
  $region19: #{tpu_custom_call.1} parent=0 // pred_check_branch
    %20 = sbr.rel (0) target = $region21
  $region20: #{tpu_custom_call.1} parent=0 // pred_region
    _
  $region21: #{tpu_custom_call.1} parent=0 // pred_fallthru
    _
  // Predicated region
  $region22: #{tpu_custom_call.1} parent=0 // pred_check
    _
  $region23: #{tpu_custom_call.1} parent=0 // pred_check_branch
    %22 = sbr.rel (0) target = $region25
  $region24: #{tpu_custom_call.1} parent=0 // pred_region
    _
  $region25: #{tpu_custom_call.1} parent=0 // pred_fallthru
    _
  %v23 = vld [vmem:[%s1] sm:$0xff]
  %v24 = vld [vmem:[%s1 + $0x8] sm:$0xff]
  %v25 = vld [vmem:[%s1 + $0x10] sm:$0xff]
  %v26 = vld [vmem:[%s1 + $0x18] sm:$0xff]
  %v27 = vld [vmem:[%s2] sm:$0xff]
  %v28 = vld [vmem:[%s2 + $0x8] sm:$0xff]
  %v29 = vld [vmem:[%s2 + $0x10] sm:$0xff]
  %v30 = vld [vmem:[%s2 + $0x18] sm:$0xff]
  %v31 = vld [vmem:[%s3] sm:$0x1]
  %v32 = vld [vmem:[%s0] sm:$0xff]
  %v33 = vld [vmem:[%s0 + $0x8] sm:$0xff]
  %v34 = vld [vmem:[%s0 + $0x10] sm:$0xff]
  %v35 = vld [vmem:[%s0 + $0x18] sm:$0xff]
  %v36 = vld [vmem:[%s0 + $0x20] sm:$0xff]
  %v37 = vld [vmem:[%s0 + $0x28] sm:$0xff]
  %v38 = vld [vmem:[%s0 + $0x30] sm:$0xff]
  %v39 = vld [vmem:[%s0 + $0x38] sm:$0xff]
  %v41 = vlaneseq
  %v42 = vshrl.u32 %v41, 7
  %v43 = vsub.s32 0, %v42
  %v44 = vrot.slane %v31, %v43
  %vm46 = vcmask 261120
  %v48 = vsel %vm46, %v32, 0
  %v51 = vsel %vm46, %v33, 0
  %v54 = vsel %vm46, %v34, 0
  %v57 = vsel %vm46, %v35, 0
  %v60 = vsel %vm46, %v36, 0
  %v63 = vsel %vm46, %v37, 0
  %v66 = vsel %vm46, %v38, 0
  %v69 = vsel %vm46, %v39, 0
  %71 = vmatprep.subr.mxu0 0.0
  %72 = vmatpush1.msra.mxu0 0.0
  %73 = vmatprep.subr.mxu0 0.0
  %74 = vmatpush1.msra.mxu0 0.0
  %75 = vmatprep.subr.mxu0 0.0
  %76 = vmatpush1.msra.mxu0 0.0
  %77 = vmatprep.subr.mxu0 0.0
  %78 = vmatpush1.msra.mxu0 0.0
  %79 = vmatprep.subr.mxu0 0.0
  %80 = vmatpush1.msra.mxu0 0.0
  %81 = vmatprep.subr.mxu0 0.0
  %82 = vmatpush1.msra.mxu0 0.0
  %83 = vmatprep.subr.mxu0 0.0
  %84 = vmatpush1.msra.mxu0 0.0
  %85 = vmatprep.subr.mxu0 0.0
  %86 = vmatpush1.msra.mxu0 0.0
  %87 = vmatprep.subr.mxu0 0.0
  %88 = vmatpush1.msra.mxu0 0.0
  %89 = vmatprep.subr.mxu0 0.0
  %90 = vmatpush1.msra.mxu0 0.0
  %91 = vmatprep.subr.mxu0 0.0
  %92 = vmatpush1.msra.mxu0 0.0
  %93 = vmatprep.subr.mxu0 0.0
  %94 = vmatpush1.msra.mxu0 0.0
  %95 = vmatprep.subr.mxu0 0.0
  %96 = vmatpush1.msra.mxu0 %v26
  %97 = vmatprep.subr.mxu0 0.0
  %98 = vmatpush1.msra.mxu0 %v25
  %99 = vmatprep.subr.mxu0 0.0
  %100 = vmatpush1.msra.mxu0 %v24
  %101 = vmatprep.subr.mxu0 0.0
  %102 = vmatpush1.msra.mxu0 %v23
  %103 = vmatprep.subr.mxu0 0.0
  %104 = vmatpush2.msra.mxu0 0.0
  %105 = vmatprep.subr.mxu0 0.0
  %106 = vmatpush2.msra.mxu0 0.0
  %107 = vmatprep.subr.mxu0 0.0
  %108 = vmatpush2.msra.mxu0 0.0
  %109 = vmatprep.subr.mxu0 0.0
  %110 = vmatpush2.msra.mxu0 0.0
  %111 = vmatprep.subr.mxu0 0.0
  %112 = vmatpush2.msra.mxu0 0.0
  %113 = vmatprep.subr.mxu0 0.0
  %114 = vmatpush2.msra.mxu0 0.0
  %115 = vmatprep.subr.mxu0 0.0
  %116 = vmatpush2.msra.mxu0 0.0
  %117 = vmatprep.subr.mxu0 0.0
  %118 = vmatpush2.msra.mxu0 0.0
  %119 = vmatprep.subr.mxu0 0.0
  %120 = vmatpush2.msra.mxu0 0.0
  %121 = vmatprep.subr.mxu0 0.0
  %122 = vmatpush2.msra.mxu0 0.0
  %123 = vmatprep.subr.mxu0 0.0
  %124 = vmatpush2.msra.mxu0 0.0
  %125 = vmatprep.subr.mxu0 0.0
  %126 = vmatpush2.msra.mxu0 0.0
  %127 = vmatprep.subr.mxu0 0.0
  %128 = vmatpush2.msra.mxu0 0.0
  %129 = vmatprep.subr.mxu0 0.0
  %130 = vmatpush2.msra.mxu0 0.0
  %131 = vmatprep.subr.mxu0 0.0
  %132 = vmatpush2.msra.mxu0 0.0
  %133 = vmatprep.subr.mxu0 0.0
  %134 = vmatpush2.msra.mxu0 0.0
  %135 = vmatprep.mubr.f32.mxu0 0.0
  %136 = vmatmul.mubr.f32.gmra.mxu0 %v48
  %v137 = vpop.f32.mrf.mxu0
  %v138 = vadd.f32 %v44, %v137
  %v139 = vpop.f32.mrf.mxu0
  %140 = vmatprep.mubr.f32.mxu0 0.0
  %141 = vmatmul.mubr.f32.gmra.mxu0 %v51
  %v142 = vpop.f32.mrf.mxu0
  %v143 = vadd.f32 %v44, %v142
  %v144 = vpop.f32.mrf.mxu0
  %145 = vmatprep.mubr.f32.mxu0 0.0
  %146 = vmatmul.mubr.f32.gmra.mxu0 %v54
  %v147 = vpop.f32.mrf.mxu0
  %v148 = vadd.f32 %v44, %v147
  %v149 = vpop.f32.mrf.mxu0
  %150 = vmatprep.mubr.f32.mxu0 0.0
  %151 = vmatmul.mubr.f32.gmra.mxu0 %v57
  %v152 = vpop.f32.mrf.mxu0
  %v153 = vadd.f32 %v44, %v152
  %v154 = vpop.f32.mrf.mxu0
  %155 = vmatprep.mubr.f32.mxu0 0.0
  %156 = vmatmul.mubr.f32.gmra.mxu0 %v60
  %v157 = vpop.f32.mrf.mxu0
  %v158 = vadd.f32 %v44, %v157
  %v159 = vpop.f32.mrf.mxu0
  %160 = vmatprep.mubr.f32.mxu0 0.0
  %161 = vmatmul.mubr.f32.gmra.mxu0 %v63
  %v162 = vpop.f32.mrf.mxu0
  %v163 = vadd.f32 %v44, %v162
  %v164 = vpop.f32.mrf.mxu0
  %165 = vmatprep.mubr.f32.mxu0 0.0
  %166 = vmatmul.mubr.f32.gmra.mxu0 %v66
  %v167 = vpop.f32.mrf.mxu0
  %v168 = vadd.f32 %v44, %v167
  %v169 = vpop.f32.mrf.mxu0
  %170 = vmatprep.mubr.f32.mxu0 0.0
  %171 = vmatmul.mubr.f32.gmra.mxu0 %v69
  %v172 = vpop.f32.mrf.mxu0
  %v173 = vadd.f32 %v44, %v172
  %v174 = vpop.f32.mrf.mxu0
  %175 = vdwg.mxu0
  %176 = vst [vmem:[#allocation2] sm:$0xff] %v138
  %177 = vst [vmem:[#allocation2 + $0x8] sm:$0xff] %v143
  %178 = vst [vmem:[#allocation2 + $0x10] sm:$0xff] %v148
  %179 = vst [vmem:[#allocation2 + $0x18] sm:$0xff] %v153
  %180 = vst [vmem:[#allocation2 + $0x20] sm:$0xff] %v158
  %181 = vst [vmem:[#allocation2 + $0x28] sm:$0xff] %v163
  %182 = vst [vmem:[#allocation2 + $0x30] sm:$0xff] %v168
  %183 = vst [vmem:[#allocation2 + $0x38] sm:$0xff] %v173
  %v184 = vld [vmem:[#allocation2] sm:$0xff]
  %v186 = vsel %vm46, 0.0, 0
  %188 = vmatprep.subr.mxu0 0.0
  %189 = vmatpush1.msra.mxu0 0.0
  %190 = vmatprep.subr.mxu0 0.0
  %191 = vmatpush1.msra.mxu0 0.0
  %192 = vmatprep.subr.mxu0 0.0
  %193 = vmatpush1.msra.mxu0 0.0
  %194 = vmatprep.subr.mxu0 0.0
  %195 = vmatpush1.msra.mxu0 0.0
  %196 = vmatprep.subr.mxu0 0.0
  %197 = vmatpush1.msra.mxu0 0.0
  %198 = vmatprep.subr.mxu0 0.0
  %199 = vmatpush1.msra.mxu0 0.0
  %200 = vmatprep.subr.mxu0 0.0
  %201 = vmatpush1.msra.mxu0 0.0
  %202 = vmatprep.subr.mxu0 0.0
  %203 = vmatpush1.msra.mxu0 0.0
  %204 = vmatprep.subr.mxu0 0.0
  %205 = vmatpush1.msra.mxu0 0.0
  %206 = vmatprep.subr.mxu0 0.0
  %207 = vmatpush1.msra.mxu0 0.0
  %208 = vmatprep.subr.mxu0 0.0
  %209 = vmatpush1.msra.mxu0 0.0
  %210 = vmatprep.subr.mxu0 0.0
  %211 = vmatpush1.msra.mxu0 0.0
  %212 = vmatprep.subr.mxu0 0.0
  %213 = vmatpush1.msra.mxu0 %v30
  %214 = vmatprep.subr.mxu0 0.0
  %215 = vmatpush1.msra.mxu0 %v29
  %216 = vmatprep.subr.mxu0 0.0
  %217 = vmatpush1.msra.mxu0 %v28
  %218 = vmatprep.subr.mxu0 0.0
  %219 = vmatpush1.msra.mxu0 %v27
  %220 = vmatprep.subr.mxu0 0.0
  %221 = vmatpush2.msra.mxu0 0.0
  %222 = vmatprep.subr.mxu0 0.0
  %223 = vmatpush2.msra.mxu0 0.0
  %224 = vmatprep.subr.mxu0 0.0
  %225 = vmatpush2.msra.mxu0 0.0
  %226 = vmatprep.subr.mxu0 0.0
  %227 = vmatpush2.msra.mxu0 0.0
  %228 = vmatprep.subr.mxu0 0.0
  %229 = vmatpush2.msra.mxu0 0.0
  %230 = vmatprep.subr.mxu0 0.0
  %231 = vmatpush2.msra.mxu0 0.0
  %232 = vmatprep.subr.mxu0 0.0
  %233 = vmatpush2.msra.mxu0 0.0
  %234 = vmatprep.subr.mxu0 0.0
  %235 = vmatpush2.msra.mxu0 0.0
  %236 = vmatprep.subr.mxu0 0.0
  %237 = vmatpush2.msra.mxu0 0.0
  %238 = vmatprep.subr.mxu0 0.0
  %239 = vmatpush2.msra.mxu0 0.0
  %240 = vmatprep.subr.mxu0 0.0
  %241 = vmatpush2.msra.mxu0 0.0
  %242 = vmatprep.subr.mxu0 0.0
  %243 = vmatpush2.msra.mxu0 0.0
  %244 = vmatprep.subr.mxu0 0.0
  %245 = vmatpush2.msra.mxu0 0.0
  %246 = vmatprep.subr.mxu0 0.0
  %247 = vmatpush2.msra.mxu0 0.0
  %248 = vmatprep.subr.mxu0 0.0
  %249 = vmatpush2.msra.mxu0 0.0
  %250 = vmatprep.subr.mxu0 0.0
  %251 = vmatpush2.msra.mxu0 0.0
  %252 = vmatprep.mubr.f32.mxu0 0.0
  %253 = vmatmul.mubr.f32.gmra.mxu0 %v186
  %v254 = vpop.f32.mrf.mxu0
  %v255 = vadd.f32 0.0, %v254
  %v256 = vpop.f32.mrf.mxu0
  %257 = vdwg.mxu0
  %v258 = vadd.f32 %v184, %v255
  %v259 = vxor.u32 %v258, 2147483648
  %v260 = vmul.f32 %v259, 1.442695
  %v261 = vpow.pop %v260
  %v262 = vadd.f32 %v261, 1.0
  %v263 = vrcp.pop %v262
  %v264 = vmul.f32 1.0, %v263
  %v265 = vtanh.pop %v258
  %v266 = vmul.f32 %v264, 0.0
  %268 = vrot.lane.b32.xlu0 %v265, 64
  %v269 = vpop.permute.xlu0 %268
  %v271 = vmul.f32 %v264, %v269
  %273 = vrot.lane.b32.xlu0 %v271, 32
  %v274 = vpop.permute.xlu0 %273
  %v276 = vadd.f32 %v266, %v274
  %v277 = vtanh.pop %v276
  %279 = vrot.lane.b32.xlu0 %v277, 64
  %v280 = vpop.permute.xlu0 %279
  %v282 = vmul.f32 %v264, %v280
  %284 = vrot.lane.b32.xlu0 %v282, 32
  %v285 = vpop.permute.xlu0 %284
  %287 = vst.msk [vmem:[#allocation3] sm:$0xff] %vm46, %v285
  %s288 = scalar_lea.vmem [#allocation2], 8
  %v289 = vld [vmem:[%s288] sm:$0xff]
  %v290 = vsel %vm46, %v285, 0
  %292 = vmatprep.subr.mxu0 0.0
  %293 = vmatpush1.msra.mxu0 0.0
  %294 = vmatprep.subr.mxu0 0.0
  %295 = vmatpush1.msra.mxu0 0.0
  %296 = vmatprep.subr.mxu0 0.0
  %297 = vmatpush1.msra.mxu0 0.0
  %298 = vmatprep.subr.mxu0 0.0
  %299 = vmatpush1.msra.mxu0 0.0
  %300 = vmatprep.subr.mxu0 0.0
  %301 = vmatpush1.msra.mxu0 0.0
  %302 = vmatprep.subr.mxu0 0.0
  %303 = vmatpush1.msra.mxu0 0.0
  %304 = vmatprep.subr.mxu0 0.0
  %305 = vmatpush1.msra.mxu0 0.0
  %306 = vmatprep.subr.mxu0 0.0
  %307 = vmatpush1.msra.mxu0 0.0
  %308 = vmatprep.subr.mxu0 0.0
  %309 = vmatpush1.msra.mxu0 0.0
  %310 = vmatprep.subr.mxu0 0.0
  %311 = vmatpush1.msra.mxu0 0.0
  %312 = vmatprep.subr.mxu0 0.0
  %313 = vmatpush1.msra.mxu0 0.0
  %314 = vmatprep.subr.mxu0 0.0
  %315 = vmatpush1.msra.mxu0 0.0
  %316 = vmatprep.subr.mxu0 0.0
  %317 = vmatpush1.msra.mxu0 %v30
  %318 = vmatprep.subr.mxu0 0.0
  %319 = vmatpush1.msra.mxu0 %v29
  %320 = vmatprep.subr.mxu0 0.0
  %321 = vmatpush1.msra.mxu0 %v28
  %322 = vmatprep.subr.mxu0 0.0
  %323 = vmatpush1.msra.mxu0 %v27
  %324 = vmatprep.subr.mxu0 0.0
  %325 = vmatpush2.msra.mxu0 0.0
  %326 = vmatprep.subr.mxu0 0.0
  %327 = vmatpush2.msra.mxu0 0.0
  %328 = vmatprep.subr.mxu0 0.0
  %329 = vmatpush2.msra.mxu0 0.0
  %330 = vmatprep.subr.mxu0 0.0
  %331 = vmatpush2.msra.mxu0 0.0
  %332 = vmatprep.subr.mxu0 0.0
  %333 = vmatpush2.msra.mxu0 0.0
  %334 = vmatprep.subr.mxu0 0.0
  %335 = vmatpush2.msra.mxu0 0.0
  %336 = vmatprep.subr.mxu0 0.0
  %337 = vmatpush2.msra.mxu0 0.0
  %338 = vmatprep.subr.mxu0 0.0
  %339 = vmatpush2.msra.mxu0 0.0
  %340 = vmatprep.subr.mxu0 0.0
  %341 = vmatpush2.msra.mxu0 0.0
  %342 = vmatprep.subr.mxu0 0.0
  %343 = vmatpush2.msra.mxu0 0.0
  %344 = vmatprep.subr.mxu0 0.0
  %345 = vmatpush2.msra.mxu0 0.0
  %346 = vmatprep.subr.mxu0 0.0
  %347 = vmatpush2.msra.mxu0 0.0
  %348 = vmatprep.subr.mxu0 0.0
  %349 = vmatpush2.msra.mxu0 0.0
  %350 = vmatprep.subr.mxu0 0.0
  %351 = vmatpush2.msra.mxu0 0.0
  %352 = vmatprep.subr.mxu0 0.0
  %353 = vmatpush2.msra.mxu0 0.0
  %354 = vmatprep.subr.mxu0 0.0
  %355 = vmatpush2.msra.mxu0 0.0
  %356 = vmatprep.mubr.f32.mxu0 0.0
  %357 = vmatmul.mubr.f32.gmra.mxu0 %v290
  %v358 = vpop.f32.mrf.mxu0
  %v359 = vadd.f32 0.0, %v358
  %v360 = vpop.f32.mrf.mxu0
  %361 = vdwg.mxu0
  %v362 = vadd.f32 %v289, %v359
  %v363 = vxor.u32 %v362, 2147483648
  %v364 = vmul.f32 %v363, 1.442695
  %v365 = vpow.pop %v364
  %v366 = vadd.f32 %v365, 1.0
  %v367 = vrcp.pop %v366
  %v368 = vmul.f32 1.0, %v367
  %v369 = vtanh.pop %v362
  %v370 = vmul.f32 %v368, %v276
  %372 = vrot.lane.b32.xlu0 %v369, 64
  %v373 = vpop.permute.xlu0 %372
  %v375 = vmul.f32 %v368, %v373
  %377 = vrot.lane.b32.xlu0 %v375, 32
  %v378 = vpop.permute.xlu0 %377
  %v380 = vadd.f32 %v370, %v378
  %v381 = vtanh.pop %v380
  %383 = vrot.lane.b32.xlu0 %v381, 64
  %v384 = vpop.permute.xlu0 %383
  %v386 = vmul.f32 %v368, %v384
  %388 = vrot.lane.b32.xlu0 %v386, 32
  %v389 = vpop.permute.xlu0 %388
  %s391 = scalar_lea.vmem [#allocation3], 8
  %392 = vst.msk [vmem:[%s391] sm:$0xff] %vm46, %v389
  %s393 = scalar_lea.vmem [#allocation2], 16
  %v394 = vld [vmem:[%s393] sm:$0xff]
  %v395 = vsel %vm46, %v389, 0
  %397 = vmatprep.subr.mxu0 0.0
  %398 = vmatpush1.msra.mxu0 0.0
  %399 = vmatprep.subr.mxu0 0.0
  %400 = vmatpush1.msra.mxu0 0.0
  %401 = vmatprep.subr.mxu0 0.0
  %402 = vmatpush1.msra.mxu0 0.0
  %403 = vmatprep.subr.mxu0 0.0
  %404 = vmatpush1.msra.mxu0 0.0
  %405 = vmatprep.subr.mxu0 0.0
  %406 = vmatpush1.msra.mxu0 0.0
  %407 = vmatprep.subr.mxu0 0.0
  %408 = vmatpush1.msra.mxu0 0.0
  %409 = vmatprep.subr.mxu0 0.0
  %410 = vmatpush1.msra.mxu0 0.0
  %411 = vmatprep.subr.mxu0 0.0
  %412 = vmatpush1.msra.mxu0 0.0
  %413 = vmatprep.subr.mxu0 0.0
  %414 = vmatpush1.msra.mxu0 0.0
  %415 = vmatprep.subr.mxu0 0.0
  %416 = vmatpush1.msra.mxu0 0.0
  %417 = vmatprep.subr.mxu0 0.0
  %418 = vmatpush1.msra.mxu0 0.0
  %419 = vmatprep.subr.mxu0 0.0
  %420 = vmatpush1.msra.mxu0 0.0
  %421 = vmatprep.subr.mxu0 0.0
  %422 = vmatpush1.msra.mxu0 %v30
  %423 = vmatprep.subr.mxu0 0.0
  %424 = vmatpush1.msra.mxu0 %v29
  %425 = vmatprep.subr.mxu0 0.0
  %426 = vmatpush1.msra.mxu0 %v28
  %427 = vmatprep.subr.mxu0 0.0
  %428 = vmatpush1.msra.mxu0 %v27
  %429 = vmatprep.subr.mxu0 0.0
  %430 = vmatpush2.msra.mxu0 0.0
  %431 = vmatprep.subr.mxu0 0.0
  %432 = vmatpush2.msra.mxu0 0.0
  %433 = vmatprep.subr.mxu0 0.0
  %434 = vmatpush2.msra.mxu0 0.0
  %435 = vmatprep.subr.mxu0 0.0
  %436 = vmatpush2.msra.mxu0 0.0
  %437 = vmatprep.subr.mxu0 0.0
  %438 = vmatpush2.msra.mxu0 0.0
  %439 = vmatprep.subr.mxu0 0.0
  %440 = vmatpush2.msra.mxu0 0.0
  %441 = vmatprep.subr.mxu0 0.0
  %442 = vmatpush2.msra.mxu0 0.0
  %443 = vmatprep.subr.mxu0 0.0
  %444 = vmatpush2.msra.mxu0 0.0
  %445 = vmatprep.subr.mxu0 0.0
  %446 = vmatpush2.msra.mxu0 0.0
  %447 = vmatprep.subr.mxu0 0.0
  %448 = vmatpush2.msra.mxu0 0.0
  %449 = vmatprep.subr.mxu0 0.0
  %450 = vmatpush2.msra.mxu0 0.0
  %451 = vmatprep.subr.mxu0 0.0
  %452 = vmatpush2.msra.mxu0 0.0
  %453 = vmatprep.subr.mxu0 0.0
  %454 = vmatpush2.msra.mxu0 0.0
  %455 = vmatprep.subr.mxu0 0.0
  %456 = vmatpush2.msra.mxu0 0.0
  %457 = vmatprep.subr.mxu0 0.0
  %458 = vmatpush2.msra.mxu0 0.0
  %459 = vmatprep.subr.mxu0 0.0
  %460 = vmatpush2.msra.mxu0 0.0
  %461 = vmatprep.mubr.f32.mxu0 0.0
  %462 = vmatmul.mubr.f32.gmra.mxu0 %v395
  %v463 = vpop.f32.mrf.mxu0
  %v464 = vadd.f32 0.0, %v463
  %v465 = vpop.f32.mrf.mxu0
  %466 = vdwg.mxu0
  %v467 = vadd.f32 %v394, %v464
  %v468 = vxor.u32 %v467, 2147483648
  %v469 = vmul.f32 %v468, 1.442695
  %v470 = vpow.pop %v469
  %v471 = vadd.f32 %v470, 1.0
  %v472 = vrcp.pop %v471
  %v473 = vmul.f32 1.0, %v472
  %v474 = vtanh.pop %v467
  %v475 = vmul.f32 %v473, %v380
  %477 = vrot.lane.b32.xlu0 %v474, 64
  %v478 = vpop.permute.xlu0 %477
  %v480 = vmul.f32 %v473, %v478
  %482 = vrot.lane.b32.xlu0 %v480, 32
  %v483 = vpop.permute.xlu0 %482
  %v485 = vadd.f32 %v475, %v483
  %v486 = vtanh.pop %v485
  %488 = vrot.lane.b32.xlu0 %v486, 64
  %v489 = vpop.permute.xlu0 %488
  %v491 = vmul.f32 %v473, %v489
  %493 = vrot.lane.b32.xlu0 %v491, 32
  %v494 = vpop.permute.xlu0 %493
  %s496 = scalar_lea.vmem [#allocation3], 16
  %497 = vst.msk [vmem:[%s496] sm:$0xff] %vm46, %v494
  %s498 = scalar_lea.vmem [#allocation2], 24
  %v499 = vld [vmem:[%s498] sm:$0xff]
  %v500 = vsel %vm46, %v494, 0
  %502 = vmatprep.subr.mxu0 0.0
  %503 = vmatpush1.msra.mxu0 0.0
  %504 = vmatprep.subr.mxu0 0.0
  %505 = vmatpush1.msra.mxu0 0.0
  %506 = vmatprep.subr.mxu0 0.0
  %507 = vmatpush1.msra.mxu0 0.0
  %508 = vmatprep.subr.mxu0 0.0
  %509 = vmatpush1.msra.mxu0 0.0
  %510 = vmatprep.subr.mxu0 0.0
  %511 = vmatpush1.msra.mxu0 0.0
  %512 = vmatprep.subr.mxu0 0.0
  %513 = vmatpush1.msra.mxu0 0.0
  %514 = vmatprep.subr.mxu0 0.0
  %515 = vmatpush1.msra.mxu0 0.0
  %516 = vmatprep.subr.mxu0 0.0
  %517 = vmatpush1.msra.mxu0 0.0
  %518 = vmatprep.subr.mxu0 0.0
  %519 = vmatpush1.msra.mxu0 0.0
  %520 = vmatprep.subr.mxu0 0.0
  %521 = vmatpush1.msra.mxu0 0.0
  %522 = vmatprep.subr.mxu0 0.0
  %523 = vmatpush1.msra.mxu0 0.0
  %524 = vmatprep.subr.mxu0 0.0
  %525 = vmatpush1.msra.mxu0 0.0
  %526 = vmatprep.subr.mxu0 0.0
  %527 = vmatpush1.msra.mxu0 %v30
  %528 = vmatprep.subr.mxu0 0.0
  %529 = vmatpush1.msra.mxu0 %v29
  %530 = vmatprep.subr.mxu0 0.0
  %531 = vmatpush1.msra.mxu0 %v28
  %532 = vmatprep.subr.mxu0 0.0
  %533 = vmatpush1.msra.mxu0 %v27
  %534 = vmatprep.subr.mxu0 0.0
  %535 = vmatpush2.msra.mxu0 0.0
  %536 = vmatprep.subr.mxu0 0.0
  %537 = vmatpush2.msra.mxu0 0.0
  %538 = vmatprep.subr.mxu0 0.0
  %539 = vmatpush2.msra.mxu0 0.0
  %540 = vmatprep.subr.mxu0 0.0
  %541 = vmatpush2.msra.mxu0 0.0
  %542 = vmatprep.subr.mxu0 0.0
  %543 = vmatpush2.msra.mxu0 0.0
  %544 = vmatprep.subr.mxu0 0.0
  %545 = vmatpush2.msra.mxu0 0.0
  %546 = vmatprep.subr.mxu0 0.0
  %547 = vmatpush2.msra.mxu0 0.0
  %548 = vmatprep.subr.mxu0 0.0
  %549 = vmatpush2.msra.mxu0 0.0
  %550 = vmatprep.subr.mxu0 0.0
  %551 = vmatpush2.msra.mxu0 0.0
  %552 = vmatprep.subr.mxu0 0.0
  %553 = vmatpush2.msra.mxu0 0.0
  %554 = vmatprep.subr.mxu0 0.0
  %555 = vmatpush2.msra.mxu0 0.0
  %556 = vmatprep.subr.mxu0 0.0
  %557 = vmatpush2.msra.mxu0 0.0
  %558 = vmatprep.subr.mxu0 0.0
  %559 = vmatpush2.msra.mxu0 0.0
  %560 = vmatprep.subr.mxu0 0.0
  %561 = vmatpush2.msra.mxu0 0.0
  %562 = vmatprep.subr.mxu0 0.0
  %563 = vmatpush2.msra.mxu0 0.0
  %564 = vmatprep.subr.mxu0 0.0
  %565 = vmatpush2.msra.mxu0 0.0
  %566 = vmatprep.mubr.f32.mxu0 0.0
  %567 = vmatmul.mubr.f32.gmra.mxu0 %v500
  %v568 = vpop.f32.mrf.mxu0
  %v569 = vadd.f32 0.0, %v568
  %v570 = vpop.f32.mrf.mxu0
  %571 = vdwg.mxu0
  %v572 = vadd.f32 %v499, %v569
  %v573 = vxor.u32 %v572, 2147483648
  %v574 = vmul.f32 %v573, 1.442695
  %v575 = vpow.pop %v574
  %v576 = vadd.f32 %v575, 1.0
  %v577 = vrcp.pop %v576
  %v578 = vmul.f32 1.0, %v577
  %v579 = vtanh.pop %v572
  %v580 = vmul.f32 %v578, %v485
  %582 = vrot.lane.b32.xlu0 %v579, 64
  %v583 = vpop.permute.xlu0 %582
  %v585 = vmul.f32 %v578, %v583
  %587 = vrot.lane.b32.xlu0 %v585, 32
  %v588 = vpop.permute.xlu0 %587
  %v590 = vadd.f32 %v580, %v588
  %v591 = vtanh.pop %v590
  %593 = vrot.lane.b32.xlu0 %v591, 64
  %v594 = vpop.permute.xlu0 %593
  %v596 = vmul.f32 %v578, %v594
  %598 = vrot.lane.b32.xlu0 %v596, 32
  %v599 = vpop.permute.xlu0 %598
  %s601 = scalar_lea.vmem [#allocation3], 24
  %602 = vst.msk [vmem:[%s601] sm:$0xff] %vm46, %v599
  %s603 = scalar_lea.vmem [#allocation2], 32
  %v604 = vld [vmem:[%s603] sm:$0xff]
  %v605 = vsel %vm46, %v599, 0
  %607 = vmatprep.subr.mxu0 0.0
  %608 = vmatpush1.msra.mxu0 0.0
  %609 = vmatprep.subr.mxu0 0.0
  %610 = vmatpush1.msra.mxu0 0.0
  %611 = vmatprep.subr.mxu0 0.0
  %612 = vmatpush1.msra.mxu0 0.0
  %613 = vmatprep.subr.mxu0 0.0
  %614 = vmatpush1.msra.mxu0 0.0
  %615 = vmatprep.subr.mxu0 0.0
  %616 = vmatpush1.msra.mxu0 0.0
  %617 = vmatprep.subr.mxu0 0.0
  %618 = vmatpush1.msra.mxu0 0.0
  %619 = vmatprep.subr.mxu0 0.0
  %620 = vmatpush1.msra.mxu0 0.0
  %621 = vmatprep.subr.mxu0 0.0
  %622 = vmatpush1.msra.mxu0 0.0
  %623 = vmatprep.subr.mxu0 0.0
  %624 = vmatpush1.msra.mxu0 0.0
  %625 = vmatprep.subr.mxu0 0.0
  %626 = vmatpush1.msra.mxu0 0.0
  %627 = vmatprep.subr.mxu0 0.0
  %628 = vmatpush1.msra.mxu0 0.0
  %629 = vmatprep.subr.mxu0 0.0
  %630 = vmatpush1.msra.mxu0 0.0
  %631 = vmatprep.subr.mxu0 0.0
  %632 = vmatpush1.msra.mxu0 %v30
  %633 = vmatprep.subr.mxu0 0.0
  %634 = vmatpush1.msra.mxu0 %v29
  %635 = vmatprep.subr.mxu0 0.0
  %636 = vmatpush1.msra.mxu0 %v28
  %637 = vmatprep.subr.mxu0 0.0
  %638 = vmatpush1.msra.mxu0 %v27
  %639 = vmatprep.subr.mxu0 0.0
  %640 = vmatpush2.msra.mxu0 0.0
  %641 = vmatprep.subr.mxu0 0.0
  %642 = vmatpush2.msra.mxu0 0.0
  %643 = vmatprep.subr.mxu0 0.0
  %644 = vmatpush2.msra.mxu0 0.0
  %645 = vmatprep.subr.mxu0 0.0
  %646 = vmatpush2.msra.mxu0 0.0
  %647 = vmatprep.subr.mxu0 0.0
  %648 = vmatpush2.msra.mxu0 0.0
  %649 = vmatprep.subr.mxu0 0.0
  %650 = vmatpush2.msra.mxu0 0.0
  %651 = vmatprep.subr.mxu0 0.0
  %652 = vmatpush2.msra.mxu0 0.0
  %653 = vmatprep.subr.mxu0 0.0
  %654 = vmatpush2.msra.mxu0 0.0
  %655 = vmatprep.subr.mxu0 0.0
  %656 = vmatpush2.msra.mxu0 0.0
  %657 = vmatprep.subr.mxu0 0.0
  %658 = vmatpush2.msra.mxu0 0.0
  %659 = vmatprep.subr.mxu0 0.0
  %660 = vmatpush2.msra.mxu0 0.0
  %661 = vmatprep.subr.mxu0 0.0
  %662 = vmatpush2.msra.mxu0 0.0
  %663 = vmatprep.subr.mxu0 0.0
  %664 = vmatpush2.msra.mxu0 0.0
  %665 = vmatprep.subr.mxu0 0.0
  %666 = vmatpush2.msra.mxu0 0.0
  %667 = vmatprep.subr.mxu0 0.0
  %668 = vmatpush2.msra.mxu0 0.0
  %669 = vmatprep.subr.mxu0 0.0
  %670 = vmatpush2.msra.mxu0 0.0
  %671 = vmatprep.mubr.f32.mxu0 0.0
  %672 = vmatmul.mubr.f32.gmra.mxu0 %v605
  %v673 = vpop.f32.mrf.mxu0
  %v674 = vadd.f32 0.0, %v673
  %v675 = vpop.f32.mrf.mxu0
  %676 = vdwg.mxu0
  %v677 = vadd.f32 %v604, %v674
  %v678 = vxor.u32 %v677, 2147483648
  %v679 = vmul.f32 %v678, 1.442695
  %v680 = vpow.pop %v679
  %v681 = vadd.f32 %v680, 1.0
  %v682 = vrcp.pop %v681
  %v683 = vmul.f32 1.0, %v682
  %v684 = vtanh.pop %v677
  %v685 = vmul.f32 %v683, %v590
  %687 = vrot.lane.b32.xlu0 %v684, 64
  %v688 = vpop.permute.xlu0 %687
  %v690 = vmul.f32 %v683, %v688
  %692 = vrot.lane.b32.xlu0 %v690, 32
  %v693 = vpop.permute.xlu0 %692
  %v695 = vadd.f32 %v685, %v693
  %v696 = vtanh.pop %v695
  %698 = vrot.lane.b32.xlu0 %v696, 64
  %v699 = vpop.permute.xlu0 %698
  %v701 = vmul.f32 %v683, %v699
  %703 = vrot.lane.b32.xlu0 %v701, 32
  %v704 = vpop.permute.xlu0 %703
  %s706 = scalar_lea.vmem [#allocation3], 32
  %707 = vst.msk [vmem:[%s706] sm:$0xff] %vm46, %v704
  %s708 = scalar_lea.vmem [#allocation2], 40
  %v709 = vld [vmem:[%s708] sm:$0xff]
  %v710 = vsel %vm46, %v704, 0
  %712 = vmatprep.subr.mxu0 0.0
  %713 = vmatpush1.msra.mxu0 0.0
  %714 = vmatprep.subr.mxu0 0.0
  %715 = vmatpush1.msra.mxu0 0.0
  %716 = vmatprep.subr.mxu0 0.0
  %717 = vmatpush1.msra.mxu0 0.0
  %718 = vmatprep.subr.mxu0 0.0
  %719 = vmatpush1.msra.mxu0 0.0
  %720 = vmatprep.subr.mxu0 0.0
  %721 = vmatpush1.msra.mxu0 0.0
  %722 = vmatprep.subr.mxu0 0.0
  %723 = vmatpush1.msra.mxu0 0.0
  %724 = vmatprep.subr.mxu0 0.0
  %725 = vmatpush1.msra.mxu0 0.0
  %726 = vmatprep.subr.mxu0 0.0
  %727 = vmatpush1.msra.mxu0 0.0
  %728 = vmatprep.subr.mxu0 0.0
  %729 = vmatpush1.msra.mxu0 0.0
  %730 = vmatprep.subr.mxu0 0.0
  %731 = vmatpush1.msra.mxu0 0.0
  %732 = vmatprep.subr.mxu0 0.0
  %733 = vmatpush1.msra.mxu0 0.0
  %734 = vmatprep.subr.mxu0 0.0
  %735 = vmatpush1.msra.mxu0 0.0
  %736 = vmatprep.subr.mxu0 0.0
  %737 = vmatpush1.msra.mxu0 %v30
  %738 = vmatprep.subr.mxu0 0.0
  %739 = vmatpush1.msra.mxu0 %v29
  %740 = vmatprep.subr.mxu0 0.0
  %741 = vmatpush1.msra.mxu0 %v28
  %742 = vmatprep.subr.mxu0 0.0
  %743 = vmatpush1.msra.mxu0 %v27
  %744 = vmatprep.subr.mxu0 0.0
  %745 = vmatpush2.msra.mxu0 0.0
  %746 = vmatprep.subr.mxu0 0.0
  %747 = vmatpush2.msra.mxu0 0.0
  %748 = vmatprep.subr.mxu0 0.0
  %749 = vmatpush2.msra.mxu0 0.0
  %750 = vmatprep.subr.mxu0 0.0
  %751 = vmatpush2.msra.mxu0 0.0
  %752 = vmatprep.subr.mxu0 0.0
  %753 = vmatpush2.msra.mxu0 0.0
  %754 = vmatprep.subr.mxu0 0.0
  %755 = vmatpush2.msra.mxu0 0.0
  %756 = vmatprep.subr.mxu0 0.0
  %757 = vmatpush2.msra.mxu0 0.0
  %758 = vmatprep.subr.mxu0 0.0
  %759 = vmatpush2.msra.mxu0 0.0
  %760 = vmatprep.subr.mxu0 0.0
  %761 = vmatpush2.msra.mxu0 0.0
  %762 = vmatprep.subr.mxu0 0.0
  %763 = vmatpush2.msra.mxu0 0.0
  %764 = vmatprep.subr.mxu0 0.0
  %765 = vmatpush2.msra.mxu0 0.0
  %766 = vmatprep.subr.mxu0 0.0
  %767 = vmatpush2.msra.mxu0 0.0
  %768 = vmatprep.subr.mxu0 0.0
  %769 = vmatpush2.msra.mxu0 0.0
  %770 = vmatprep.subr.mxu0 0.0
  %771 = vmatpush2.msra.mxu0 0.0
  %772 = vmatprep.subr.mxu0 0.0
  %773 = vmatpush2.msra.mxu0 0.0
  %774 = vmatprep.subr.mxu0 0.0
  %775 = vmatpush2.msra.mxu0 0.0
  %776 = vmatprep.mubr.f32.mxu0 0.0
  %777 = vmatmul.mubr.f32.gmra.mxu0 %v710
  %v778 = vpop.f32.mrf.mxu0
  %v779 = vadd.f32 0.0, %v778
  %v780 = vpop.f32.mrf.mxu0
  %781 = vdwg.mxu0
  %v782 = vadd.f32 %v709, %v779
  %v783 = vxor.u32 %v782, 2147483648
  %v784 = vmul.f32 %v783, 1.442695
  %v785 = vpow.pop %v784
  %v786 = vadd.f32 %v785, 1.0
  %v787 = vrcp.pop %v786
  %v788 = vmul.f32 1.0, %v787
  %v789 = vtanh.pop %v782
  %v790 = vmul.f32 %v788, %v695
  %792 = vrot.lane.b32.xlu0 %v789, 64
  %v793 = vpop.permute.xlu0 %792
  %v795 = vmul.f32 %v788, %v793
  %797 = vrot.lane.b32.xlu0 %v795, 32
  %v798 = vpop.permute.xlu0 %797
  %v800 = vadd.f32 %v790, %v798
  %v801 = vtanh.pop %v800
  %803 = vrot.lane.b32.xlu0 %v801, 64
  %v804 = vpop.permute.xlu0 %803
  %v806 = vmul.f32 %v788, %v804
  %808 = vrot.lane.b32.xlu0 %v806, 32
  %v809 = vpop.permute.xlu0 %808
  %s811 = scalar_lea.vmem [#allocation3], 40
  %812 = vst.msk [vmem:[%s811] sm:$0xff] %vm46, %v809
  %s813 = scalar_lea.vmem [#allocation2], 48
  %v814 = vld [vmem:[%s813] sm:$0xff]
  %v815 = vsel %vm46, %v809, 0
  %817 = vmatprep.subr.mxu0 0.0
  %818 = vmatpush1.msra.mxu0 0.0
  %819 = vmatprep.subr.mxu0 0.0
  %820 = vmatpush1.msra.mxu0 0.0
  %821 = vmatprep.subr.mxu0 0.0
  %822 = vmatpush1.msra.mxu0 0.0
  %823 = vmatprep.subr.mxu0 0.0
  %824 = vmatpush1.msra.mxu0 0.0
  %825 = vmatprep.subr.mxu0 0.0
  %826 = vmatpush1.msra.mxu0 0.0
  %827 = vmatprep.subr.mxu0 0.0
  %828 = vmatpush1.msra.mxu0 0.0
  %829 = vmatprep.subr.mxu0 0.0
  %830 = vmatpush1.msra.mxu0 0.0
  %831 = vmatprep.subr.mxu0 0.0
  %832 = vmatpush1.msra.mxu0 0.0
  %833 = vmatprep.subr.mxu0 0.0
  %834 = vmatpush1.msra.mxu0 0.0
  %835 = vmatprep.subr.mxu0 0.0
  %836 = vmatpush1.msra.mxu0 0.0
  %837 = vmatprep.subr.mxu0 0.0
  %838 = vmatpush1.msra.mxu0 0.0
  %839 = vmatprep.subr.mxu0 0.0
  %840 = vmatpush1.msra.mxu0 0.0
  %841 = vmatprep.subr.mxu0 0.0
  %842 = vmatpush1.msra.mxu0 %v30
  %843 = vmatprep.subr.mxu0 0.0
  %844 = vmatpush1.msra.mxu0 %v29
  %845 = vmatprep.subr.mxu0 0.0
  %846 = vmatpush1.msra.mxu0 %v28
  %847 = vmatprep.subr.mxu0 0.0
  %848 = vmatpush1.msra.mxu0 %v27
  %849 = vmatprep.subr.mxu0 0.0
  %850 = vmatpush2.msra.mxu0 0.0
  %851 = vmatprep.subr.mxu0 0.0
  %852 = vmatpush2.msra.mxu0 0.0
  %853 = vmatprep.subr.mxu0 0.0
  %854 = vmatpush2.msra.mxu0 0.0
  %855 = vmatprep.subr.mxu0 0.0
  %856 = vmatpush2.msra.mxu0 0.0
  %857 = vmatprep.subr.mxu0 0.0
  %858 = vmatpush2.msra.mxu0 0.0
  %859 = vmatprep.subr.mxu0 0.0
  %860 = vmatpush2.msra.mxu0 0.0
  %861 = vmatprep.subr.mxu0 0.0
  %862 = vmatpush2.msra.mxu0 0.0
  %863 = vmatprep.subr.mxu0 0.0
  %864 = vmatpush2.msra.mxu0 0.0
  %865 = vmatprep.subr.mxu0 0.0
  %866 = vmatpush2.msra.mxu0 0.0
  %867 = vmatprep.subr.mxu0 0.0
  %868 = vmatpush2.msra.mxu0 0.0
  %869 = vmatprep.subr.mxu0 0.0
  %870 = vmatpush2.msra.mxu0 0.0
  %871 = vmatprep.subr.mxu0 0.0
  %872 = vmatpush2.msra.mxu0 0.0
  %873 = vmatprep.subr.mxu0 0.0
  %874 = vmatpush2.msra.mxu0 0.0
  %875 = vmatprep.subr.mxu0 0.0
  %876 = vmatpush2.msra.mxu0 0.0
  %877 = vmatprep.subr.mxu0 0.0
  %878 = vmatpush2.msra.mxu0 0.0
  %879 = vmatprep.subr.mxu0 0.0
  %880 = vmatpush2.msra.mxu0 0.0
  %881 = vmatprep.mubr.f32.mxu0 0.0
  %882 = vmatmul.mubr.f32.gmra.mxu0 %v815
  %v883 = vpop.f32.mrf.mxu0
  %v884 = vadd.f32 0.0, %v883
  %v885 = vpop.f32.mrf.mxu0
  %886 = vdwg.mxu0
  %v887 = vadd.f32 %v814, %v884
  %v888 = vxor.u32 %v887, 2147483648
  %v889 = vmul.f32 %v888, 1.442695
  %v890 = vpow.pop %v889
  %v891 = vadd.f32 %v890, 1.0
  %v892 = vrcp.pop %v891
  %v893 = vmul.f32 1.0, %v892
  %v894 = vtanh.pop %v887
  %v895 = vmul.f32 %v893, %v800
  %897 = vrot.lane.b32.xlu0 %v894, 64
  %v898 = vpop.permute.xlu0 %897
  %v900 = vmul.f32 %v893, %v898
  %902 = vrot.lane.b32.xlu0 %v900, 32
  %v903 = vpop.permute.xlu0 %902
  %v905 = vadd.f32 %v895, %v903
  %v906 = vtanh.pop %v905
  %908 = vrot.lane.b32.xlu0 %v906, 64
  %v909 = vpop.permute.xlu0 %908
  %v911 = vmul.f32 %v893, %v909
  %913 = vrot.lane.b32.xlu0 %v911, 32
  %v914 = vpop.permute.xlu0 %913
  %s916 = scalar_lea.vmem [#allocation3], 48
  %917 = vst.msk [vmem:[%s916] sm:$0xff] %vm46, %v914
  %s918 = scalar_lea.vmem [#allocation2], 56
  %v919 = vld [vmem:[%s918] sm:$0xff]
  %v920 = vsel %vm46, %v914, 0
  %922 = vmatprep.subr.mxu0 0.0
  %923 = vmatpush1.msra.mxu0 0.0
  %924 = vmatprep.subr.mxu0 0.0
  %925 = vmatpush1.msra.mxu0 0.0
  %926 = vmatprep.subr.mxu0 0.0
  %927 = vmatpush1.msra.mxu0 0.0
  %928 = vmatprep.subr.mxu0 0.0
  %929 = vmatpush1.msra.mxu0 0.0
  %930 = vmatprep.subr.mxu0 0.0
  %931 = vmatpush1.msra.mxu0 0.0
  %932 = vmatprep.subr.mxu0 0.0
  %933 = vmatpush1.msra.mxu0 0.0
  %934 = vmatprep.subr.mxu0 0.0
  %935 = vmatpush1.msra.mxu0 0.0
  %936 = vmatprep.subr.mxu0 0.0
  %937 = vmatpush1.msra.mxu0 0.0
  %938 = vmatprep.subr.mxu0 0.0
  %939 = vmatpush1.msra.mxu0 0.0
  %940 = vmatprep.subr.mxu0 0.0
  %941 = vmatpush1.msra.mxu0 0.0
  %942 = vmatprep.subr.mxu0 0.0
  %943 = vmatpush1.msra.mxu0 0.0
  %944 = vmatprep.subr.mxu0 0.0
  %945 = vmatpush1.msra.mxu0 0.0
  %946 = vmatprep.subr.mxu0 0.0
  %947 = vmatpush1.msra.mxu0 %v30
  %948 = vmatprep.subr.mxu0 0.0
  %949 = vmatpush1.msra.mxu0 %v29
  %950 = vmatprep.subr.mxu0 0.0
  %951 = vmatpush1.msra.mxu0 %v28
  %952 = vmatprep.subr.mxu0 0.0
  %953 = vmatpush1.msra.mxu0 %v27
  %954 = vmatprep.subr.mxu0 0.0
  %955 = vmatpush2.msra.mxu0 0.0
  %956 = vmatprep.subr.mxu0 0.0
  %957 = vmatpush2.msra.mxu0 0.0
  %958 = vmatprep.subr.mxu0 0.0
  %959 = vmatpush2.msra.mxu0 0.0
  %960 = vmatprep.subr.mxu0 0.0
  %961 = vmatpush2.msra.mxu0 0.0
  %962 = vmatprep.subr.mxu0 0.0
  %963 = vmatpush2.msra.mxu0 0.0
  %964 = vmatprep.subr.mxu0 0.0
  %965 = vmatpush2.msra.mxu0 0.0
  %966 = vmatprep.subr.mxu0 0.0
  %967 = vmatpush2.msra.mxu0 0.0
  %968 = vmatprep.subr.mxu0 0.0
  %969 = vmatpush2.msra.mxu0 0.0
  %970 = vmatprep.subr.mxu0 0.0
  %971 = vmatpush2.msra.mxu0 0.0
  %972 = vmatprep.subr.mxu0 0.0
  %973 = vmatpush2.msra.mxu0 0.0
  %974 = vmatprep.subr.mxu0 0.0
  %975 = vmatpush2.msra.mxu0 0.0
  %976 = vmatprep.subr.mxu0 0.0
  %977 = vmatpush2.msra.mxu0 0.0
  %978 = vmatprep.subr.mxu0 0.0
  %979 = vmatpush2.msra.mxu0 0.0
  %980 = vmatprep.subr.mxu0 0.0
  %981 = vmatpush2.msra.mxu0 0.0
  %982 = vmatprep.subr.mxu0 0.0
  %983 = vmatpush2.msra.mxu0 0.0
  %984 = vmatprep.subr.mxu0 0.0
  %985 = vmatpush2.msra.mxu0 0.0
  %986 = vmatprep.mubr.f32.mxu0 0.0
  %987 = vmatmul.mubr.f32.gmra.mxu0 %v920
  %v988 = vpop.f32.mrf.mxu0
  %v989 = vadd.f32 0.0, %v988
  %v990 = vpop.f32.mrf.mxu0
  %991 = vdwg.mxu0
  %v992 = vadd.f32 %v919, %v989
  %v993 = vxor.u32 %v992, 2147483648
  %v994 = vmul.f32 %v993, 1.442695
  %v995 = vpow.pop %v994
  %v996 = vadd.f32 %v995, 1.0
  %v997 = vrcp.pop %v996
  %v998 = vmul.f32 1.0, %v997
  %v999 = vtanh.pop %v992
  %v1000 = vmul.f32 %v998, %v905
  %1002 = vrot.lane.b32.xlu0 %v999, 64
  %v1003 = vpop.permute.xlu0 %1002
  %v1005 = vmul.f32 %v998, %v1003
  %1007 = vrot.lane.b32.xlu0 %v1005, 32
  %v1008 = vpop.permute.xlu0 %1007
  %v1010 = vadd.f32 %v1000, %v1008
  %v1011 = vtanh.pop %v1010
  %1013 = vrot.lane.b32.xlu0 %v1011, 64
  %v1014 = vpop.permute.xlu0 %1013
  %v1016 = vmul.f32 %v998, %v1014
  %1018 = vrot.lane.b32.xlu0 %v1016, 32
  %v1019 = vpop.permute.xlu0 %1018
  %s1021 = scalar_lea.vmem [#allocation3], 56
  %1022 = vst.msk [vmem:[%s1021] sm:$0xff] %vm46, %v1019
  %s1023 = scalar_lea.vmem %s1, 32
  %v1024 = vld [vmem:[%s1023] sm:$0xff]
  %v1025 = vld [vmem:[%s1023 + $0x8] sm:$0xff]
  %v1026 = vld [vmem:[%s1023 + $0x10] sm:$0xff]
  %v1027 = vld [vmem:[%s1023 + $0x18] sm:$0xff]
  %s1028 = scalar_lea.vmem %s2, 32
  %v1029 = vld [vmem:[%s1028] sm:$0xff]
  %v1030 = vld [vmem:[%s1028 + $0x8] sm:$0xff]
  %v1031 = vld [vmem:[%s1028 + $0x10] sm:$0xff]
  %v1032 = vld [vmem:[%s1028 + $0x18] sm:$0xff]
  %s1033 = scalar_lea.vmem %s3, 1
  %v1034 = vld [vmem:[%s1033] sm:$0x1]
  %v1035 = vld [vmem:[#allocation3] sm:$0xff]
  %v1036 = vld [vmem:[#allocation3 + $0x8] sm:$0xff]
  %v1037 = vld [vmem:[#allocation3 + $0x10] sm:$0xff]
  %v1038 = vld [vmem:[#allocation3 + $0x18] sm:$0xff]
  %v1039 = vld [vmem:[#allocation3 + $0x20] sm:$0xff]
  %v1040 = vld [vmem:[#allocation3 + $0x28] sm:$0xff]
  %v1041 = vld [vmem:[#allocation3 + $0x30] sm:$0xff]
  %v1042 = vld [vmem:[#allocation3 + $0x38] sm:$0xff]
  %v1044 = vlaneseq
  %v1045 = vshrl.u32 %v1044, 7
  %v1046 = vsub.s32 0, %v1045
  %v1047 = vrot.slane %v1034, %v1046
  %v1050 = vsel %vm46, %v1035, 0
  %v1053 = vsel %vm46, %v1036, 0
  %v1056 = vsel %vm46, %v1037, 0
  %v1059 = vsel %vm46, %v1038, 0
  %v1062 = vsel %vm46, %v1039, 0
  %v1065 = vsel %vm46, %v1040, 0
  %v1068 = vsel %vm46, %v1041, 0
  %v1071 = vsel %vm46, %v1042, 0
  %1073 = vmatprep.subr.mxu0 0.0
  %1074 = vmatpush1.msra.mxu0 0.0
  %1075 = vmatprep.subr.mxu0 0.0
  %1076 = vmatpush1.msra.mxu0 0.0
  %1077 = vmatprep.subr.mxu0 0.0
  %1078 = vmatpush1.msra.mxu0 0.0
  %1079 = vmatprep.subr.mxu0 0.0
  %1080 = vmatpush1.msra.mxu0 0.0
  %1081 = vmatprep.subr.mxu0 0.0
  %1082 = vmatpush1.msra.mxu0 0.0
  %1083 = vmatprep.subr.mxu0 0.0
  %1084 = vmatpush1.msra.mxu0 0.0
  %1085 = vmatprep.subr.mxu0 0.0
  %1086 = vmatpush1.msra.mxu0 0.0
  %1087 = vmatprep.subr.mxu0 0.0
  %1088 = vmatpush1.msra.mxu0 0.0
  %1089 = vmatprep.subr.mxu0 0.0
  %1090 = vmatpush1.msra.mxu0 0.0
  %1091 = vmatprep.subr.mxu0 0.0
  %1092 = vmatpush1.msra.mxu0 0.0
  %1093 = vmatprep.subr.mxu0 0.0
  %1094 = vmatpush1.msra.mxu0 0.0
  %1095 = vmatprep.subr.mxu0 0.0
  %1096 = vmatpush1.msra.mxu0 0.0
  %1097 = vmatprep.subr.mxu0 0.0
  %1098 = vmatpush1.msra.mxu0 %v1027
  %1099 = vmatprep.subr.mxu0 0.0
  %1100 = vmatpush1.msra.mxu0 %v1026
  %1101 = vmatprep.subr.mxu0 0.0
  %1102 = vmatpush1.msra.mxu0 %v1025
  %1103 = vmatprep.subr.mxu0 0.0
  %1104 = vmatpush1.msra.mxu0 %v1024
  %1105 = vmatprep.subr.mxu0 0.0
  %1106 = vmatpush2.msra.mxu0 0.0
  %1107 = vmatprep.subr.mxu0 0.0
  %1108 = vmatpush2.msra.mxu0 0.0
  %1109 = vmatprep.subr.mxu0 0.0
  %1110 = vmatpush2.msra.mxu0 0.0
  %1111 = vmatprep.subr.mxu0 0.0
  %1112 = vmatpush2.msra.mxu0 0.0
  %1113 = vmatprep.subr.mxu0 0.0
  %1114 = vmatpush2.msra.mxu0 0.0
  %1115 = vmatprep.subr.mxu0 0.0
  %1116 = vmatpush2.msra.mxu0 0.0
  %1117 = vmatprep.subr.mxu0 0.0
  %1118 = vmatpush2.msra.mxu0 0.0
  %1119 = vmatprep.subr.mxu0 0.0
  %1120 = vmatpush2.msra.mxu0 0.0
  %1121 = vmatprep.subr.mxu0 0.0
  %1122 = vmatpush2.msra.mxu0 0.0
  %1123 = vmatprep.subr.mxu0 0.0
  %1124 = vmatpush2.msra.mxu0 0.0
  %1125 = vmatprep.subr.mxu0 0.0
  %1126 = vmatpush2.msra.mxu0 0.0
  %1127 = vmatprep.subr.mxu0 0.0
  %1128 = vmatpush2.msra.mxu0 0.0
  %1129 = vmatprep.subr.mxu0 0.0
  %1130 = vmatpush2.msra.mxu0 0.0
  %1131 = vmatprep.subr.mxu0 0.0
  %1132 = vmatpush2.msra.mxu0 0.0
  %1133 = vmatprep.subr.mxu0 0.0
  %1134 = vmatpush2.msra.mxu0 0.0
  %1135 = vmatprep.subr.mxu0 0.0
  %1136 = vmatpush2.msra.mxu0 0.0
  %1137 = vmatprep.mubr.f32.mxu0 0.0
  %1138 = vmatmul.mubr.f32.gmra.mxu0 %v1050
  %v1139 = vpop.f32.mrf.mxu0
  %v1140 = vadd.f32 %v1047, %v1139
  %v1141 = vpop.f32.mrf.mxu0
  %1142 = vmatprep.mubr.f32.mxu0 0.0
  %1143 = vmatmul.mubr.f32.gmra.mxu0 %v1053
  %v1144 = vpop.f32.mrf.mxu0
  %v1145 = vadd.f32 %v1047, %v1144
  %v1146 = vpop.f32.mrf.mxu0
  %1147 = vmatprep.mubr.f32.mxu0 0.0
  %1148 = vmatmul.mubr.f32.gmra.mxu0 %v1056
  %v1149 = vpop.f32.mrf.mxu0
  %v1150 = vadd.f32 %v1047, %v1149
  %v1151 = vpop.f32.mrf.mxu0
  %1152 = vmatprep.mubr.f32.mxu0 0.0
  %1153 = vmatmul.mubr.f32.gmra.mxu0 %v1059
  %v1154 = vpop.f32.mrf.mxu0
  %v1155 = vadd.f32 %v1047, %v1154
  %v1156 = vpop.f32.mrf.mxu0
  %1157 = vmatprep.mubr.f32.mxu0 0.0
  %1158 = vmatmul.mubr.f32.gmra.mxu0 %v1062
  %v1159 = vpop.f32.mrf.mxu0
  %v1160 = vadd.f32 %v1047, %v1159
  %v1161 = vpop.f32.mrf.mxu0
  %1162 = vmatprep.mubr.f32.mxu0 0.0
  %1163 = vmatmul.mubr.f32.gmra.mxu0 %v1065
  %v1164 = vpop.f32.mrf.mxu0
  %v1165 = vadd.f32 %v1047, %v1164
  %v1166 = vpop.f32.mrf.mxu0
  %1167 = vmatprep.mubr.f32.mxu0 0.0
  %1168 = vmatmul.mubr.f32.gmra.mxu0 %v1068
  %v1169 = vpop.f32.mrf.mxu0
  %v1170 = vadd.f32 %v1047, %v1169
  %v1171 = vpop.f32.mrf.mxu0
  %1172 = vmatprep.mubr.f32.mxu0 0.0
  %1173 = vmatmul.mubr.f32.gmra.mxu0 %v1071
  %v1174 = vpop.f32.mrf.mxu0
  %v1175 = vadd.f32 %v1047, %v1174
  %v1176 = vpop.f32.mrf.mxu0
  %1177 = vdwg.mxu0
  %1178 = vst [vmem:[#allocation2] sm:$0xff] %v1140
  %1179 = vst [vmem:[#allocation2 + $0x8] sm:$0xff] %v1145
  %1180 = vst [vmem:[#allocation2 + $0x10] sm:$0xff] %v1150
  %1181 = vst [vmem:[#allocation2 + $0x18] sm:$0xff] %v1155
  %1182 = vst [vmem:[#allocation2 + $0x20] sm:$0xff] %v1160
  %1183 = vst [vmem:[#allocation2 + $0x28] sm:$0xff] %v1165
  %1184 = vst [vmem:[#allocation2 + $0x30] sm:$0xff] %v1170
  %1185 = vst [vmem:[#allocation2 + $0x38] sm:$0xff] %v1175
  %v1186 = vld [vmem:[#allocation2] sm:$0xff]
  %1187 = vmatprep.subr.mxu0 0.0
  %1188 = vmatpush1.msra.mxu0 0.0
  %1189 = vmatprep.subr.mxu0 0.0
  %1190 = vmatpush1.msra.mxu0 0.0
  %1191 = vmatprep.subr.mxu0 0.0
  %1192 = vmatpush1.msra.mxu0 0.0
  %1193 = vmatprep.subr.mxu0 0.0
  %1194 = vmatpush1.msra.mxu0 0.0
  %1195 = vmatprep.subr.mxu0 0.0
  %1196 = vmatpush1.msra.mxu0 0.0
  %1197 = vmatprep.subr.mxu0 0.0
  %1198 = vmatpush1.msra.mxu0 0.0
  %1199 = vmatprep.subr.mxu0 0.0
  %1200 = vmatpush1.msra.mxu0 0.0
  %1201 = vmatprep.subr.mxu0 0.0
  %1202 = vmatpush1.msra.mxu0 0.0
  %1203 = vmatprep.subr.mxu0 0.0
  %1204 = vmatpush1.msra.mxu0 0.0
  %1205 = vmatprep.subr.mxu0 0.0
  %1206 = vmatpush1.msra.mxu0 0.0
  %1207 = vmatprep.subr.mxu0 0.0
  %1208 = vmatpush1.msra.mxu0 0.0
  %1209 = vmatprep.subr.mxu0 0.0
  %1210 = vmatpush1.msra.mxu0 0.0
  %1211 = vmatprep.subr.mxu0 0.0
  %1212 = vmatpush1.msra.mxu0 %v1032
  %1213 = vmatprep.subr.mxu0 0.0
  %1214 = vmatpush1.msra.mxu0 %v1031
  %1215 = vmatprep.subr.mxu0 0.0
  %1216 = vmatpush1.msra.mxu0 %v1030
  %1217 = vmatprep.subr.mxu0 0.0
  %1218 = vmatpush1.msra.mxu0 %v1029
  %1219 = vmatprep.subr.mxu0 0.0
  %1220 = vmatpush2.msra.mxu0 0.0
  %1221 = vmatprep.subr.mxu0 0.0
  %1222 = vmatpush2.msra.mxu0 0.0
  %1223 = vmatprep.subr.mxu0 0.0
  %1224 = vmatpush2.msra.mxu0 0.0
  %1225 = vmatprep.subr.mxu0 0.0
  %1226 = vmatpush2.msra.mxu0 0.0
  %1227 = vmatprep.subr.mxu0 0.0
  %1228 = vmatpush2.msra.mxu0 0.0
  %1229 = vmatprep.subr.mxu0 0.0
  %1230 = vmatpush2.msra.mxu0 0.0
  %1231 = vmatprep.subr.mxu0 0.0
  %1232 = vmatpush2.msra.mxu0 0.0
  %1233 = vmatprep.subr.mxu0 0.0
  %1234 = vmatpush2.msra.mxu0 0.0
  %1235 = vmatprep.subr.mxu0 0.0
  %1236 = vmatpush2.msra.mxu0 0.0
  %1237 = vmatprep.subr.mxu0 0.0
  %1238 = vmatpush2.msra.mxu0 0.0
  %1239 = vmatprep.subr.mxu0 0.0
  %1240 = vmatpush2.msra.mxu0 0.0
  %1241 = vmatprep.subr.mxu0 0.0
  %1242 = vmatpush2.msra.mxu0 0.0
  %1243 = vmatprep.subr.mxu0 0.0
  %1244 = vmatpush2.msra.mxu0 0.0
  %1245 = vmatprep.subr.mxu0 0.0
  %1246 = vmatpush2.msra.mxu0 0.0
  %1247 = vmatprep.subr.mxu0 0.0
  %1248 = vmatpush2.msra.mxu0 0.0
  %1249 = vmatprep.subr.mxu0 0.0
  %1250 = vmatpush2.msra.mxu0 0.0
  %1251 = vmatprep.mubr.f32.mxu0 0.0
  %1252 = vmatmul.mubr.f32.gmra.mxu0 %v186
  %v1253 = vpop.f32.mrf.mxu0
  %v1254 = vadd.f32 0.0, %v1253
  %v1255 = vpop.f32.mrf.mxu0
  %1256 = vdwg.mxu0
  %v1257 = vadd.f32 %v1186, %v1254
  %v1258 = vxor.u32 %v1257, 2147483648
  %v1259 = vmul.f32 %v1258, 1.442695
  %v1260 = vpow.pop %v1259
  %v1261 = vadd.f32 %v1260, 1.0
  %v1262 = vrcp.pop %v1261
  %v1263 = vmul.f32 1.0, %v1262
  %v1264 = vtanh.pop %v1257
  %v1265 = vmul.f32 %v1263, 0.0
  %1267 = vrot.lane.b32.xlu0 %v1264, 64
  %v1268 = vpop.permute.xlu0 %1267
  %v1270 = vmul.f32 %v1263, %v1268
  %1272 = vrot.lane.b32.xlu0 %v1270, 32
  %v1273 = vpop.permute.xlu0 %1272
  %v1275 = vadd.f32 %v1265, %v1273
  %v1276 = vtanh.pop %v1275
  %1278 = vrot.lane.b32.xlu0 %v1276, 64
  %v1279 = vpop.permute.xlu0 %1278
  %v1281 = vmul.f32 %v1263, %v1279
  %1283 = vrot.lane.b32.xlu0 %v1281, 32
  %v1284 = vpop.permute.xlu0 %1283
  %1286 = vst.msk [vmem:[#allocation3] sm:$0xff] %vm46, %v1284
  %v1287 = vld [vmem:[%s288] sm:$0xff]
  %v1288 = vsel %vm46, %v1284, 0
  %1290 = vmatprep.subr.mxu0 0.0
  %1291 = vmatpush1.msra.mxu0 0.0
  %1292 = vmatprep.subr.mxu0 0.0
  %1293 = vmatpush1.msra.mxu0 0.0
  %1294 = vmatprep.subr.mxu0 0.0
  %1295 = vmatpush1.msra.mxu0 0.0
  %1296 = vmatprep.subr.mxu0 0.0
  %1297 = vmatpush1.msra.mxu0 0.0
  %1298 = vmatprep.subr.mxu0 0.0
  %1299 = vmatpush1.msra.mxu0 0.0
  %1300 = vmatprep.subr.mxu0 0.0
  %1301 = vmatpush1.msra.mxu0 0.0
  %1302 = vmatprep.subr.mxu0 0.0
  %1303 = vmatpush1.msra.mxu0 0.0
  %1304 = vmatprep.subr.mxu0 0.0
  %1305 = vmatpush1.msra.mxu0 0.0
  %1306 = vmatprep.subr.mxu0 0.0
  %1307 = vmatpush1.msra.mxu0 0.0
  %1308 = vmatprep.subr.mxu0 0.0
  %1309 = vmatpush1.msra.mxu0 0.0
  %1310 = vmatprep.subr.mxu0 0.0
  %1311 = vmatpush1.msra.mxu0 0.0
  %1312 = vmatprep.subr.mxu0 0.0
  %1313 = vmatpush1.msra.mxu0 0.0
  %1314 = vmatprep.subr.mxu0 0.0
  %1315 = vmatpush1.msra.mxu0 %v1032
  %1316 = vmatprep.subr.mxu0 0.0
  %1317 = vmatpush1.msra.mxu0 %v1031
  %1318 = vmatprep.subr.mxu0 0.0
  %1319 = vmatpush1.msra.mxu0 %v1030
  %1320 = vmatprep.subr.mxu0 0.0
  %1321 = vmatpush1.msra.mxu0 %v1029
  %1322 = vmatprep.subr.mxu0 0.0
  %1323 = vmatpush2.msra.mxu0 0.0
  %1324 = vmatprep.subr.mxu0 0.0
  %1325 = vmatpush2.msra.mxu0 0.0
  %1326 = vmatprep.subr.mxu0 0.0
  %1327 = vmatpush2.msra.mxu0 0.0
  %1328 = vmatprep.subr.mxu0 0.0
  %1329 = vmatpush2.msra.mxu0 0.0
  %1330 = vmatprep.subr.mxu0 0.0
  %1331 = vmatpush2.msra.mxu0 0.0
  %1332 = vmatprep.subr.mxu0 0.0
  %1333 = vmatpush2.msra.mxu0 0.0
  %1334 = vmatprep.subr.mxu0 0.0
  %1335 = vmatpush2.msra.mxu0 0.0
  %1336 = vmatprep.subr.mxu0 0.0
  %1337 = vmatpush2.msra.mxu0 0.0
  %1338 = vmatprep.subr.mxu0 0.0
  %1339 = vmatpush2.msra.mxu0 0.0
  %1340 = vmatprep.subr.mxu0 0.0
  %1341 = vmatpush2.msra.mxu0 0.0
  %1342 = vmatprep.subr.mxu0 0.0
  %1343 = vmatpush2.msra.mxu0 0.0
  %1344 = vmatprep.subr.mxu0 0.0
  %1345 = vmatpush2.msra.mxu0 0.0
  %1346 = vmatprep.subr.mxu0 0.0
  %1347 = vmatpush2.msra.mxu0 0.0
  %1348 = vmatprep.subr.mxu0 0.0
  %1349 = vmatpush2.msra.mxu0 0.0
  %1350 = vmatprep.subr.mxu0 0.0
  %1351 = vmatpush2.msra.mxu0 0.0
  %1352 = vmatprep.subr.mxu0 0.0
  %1353 = vmatpush2.msra.mxu0 0.0
  %1354 = vmatprep.mubr.f32.mxu0 0.0
  %1355 = vmatmul.mubr.f32.gmra.mxu0 %v1288
  %v1356 = vpop.f32.mrf.mxu0
  %v1357 = vadd.f32 0.0, %v1356
  %v1358 = vpop.f32.mrf.mxu0
  %1359 = vdwg.mxu0
  %v1360 = vadd.f32 %v1287, %v1357
  %v1361 = vxor.u32 %v1360, 2147483648
  %v1362 = vmul.f32 %v1361, 1.442695
  %v1363 = vpow.pop %v1362
  %v1364 = vadd.f32 %v1363, 1.0
  %v1365 = vrcp.pop %v1364
  %v1366 = vmul.f32 1.0, %v1365
  %v1367 = vtanh.pop %v1360
  %v1368 = vmul.f32 %v1366, %v1275
  %1370 = vrot.lane.b32.xlu0 %v1367, 64
  %v1371 = vpop.permute.xlu0 %1370
  %v1373 = vmul.f32 %v1366, %v1371
  %1375 = vrot.lane.b32.xlu0 %v1373, 32
  %v1376 = vpop.permute.xlu0 %1375
  %v1378 = vadd.f32 %v1368, %v1376
  %v1379 = vtanh.pop %v1378
  %1381 = vrot.lane.b32.xlu0 %v1379, 64
  %v1382 = vpop.permute.xlu0 %1381
  %v1384 = vmul.f32 %v1366, %v1382
  %1386 = vrot.lane.b32.xlu0 %v1384, 32
  %v1387 = vpop.permute.xlu0 %1386
  %1389 = vst.msk [vmem:[%s391] sm:$0xff] %vm46, %v1387
  %v1390 = vld [vmem:[%s393] sm:$0xff]
  %v1391 = vsel %vm46, %v1387, 0
  %1393 = vmatprep.subr.mxu0 0.0
  %1394 = vmatpush1.msra.mxu0 0.0
  %1395 = vmatprep.subr.mxu0 0.0
  %1396 = vmatpush1.msra.mxu0 0.0
  %1397 = vmatprep.subr.mxu0 0.0
  %1398 = vmatpush1.msra.mxu0 0.0
  %1399 = vmatprep.subr.mxu0 0.0
  %1400 = vmatpush1.msra.mxu0 0.0
  %1401 = vmatprep.subr.mxu0 0.0
  %1402 = vmatpush1.msra.mxu0 0.0
  %1403 = vmatprep.subr.mxu0 0.0
  %1404 = vmatpush1.msra.mxu0 0.0
  %1405 = vmatprep.subr.mxu0 0.0
  %1406 = vmatpush1.msra.mxu0 0.0
  %1407 = vmatprep.subr.mxu0 0.0
  %1408 = vmatpush1.msra.mxu0 0.0
  %1409 = vmatprep.subr.mxu0 0.0
  %1410 = vmatpush1.msra.mxu0 0.0
  %1411 = vmatprep.subr.mxu0 0.0
  %1412 = vmatpush1.msra.mxu0 0.0
  %1413 = vmatprep.subr.mxu0 0.0
  %1414 = vmatpush1.msra.mxu0 0.0
  %1415 = vmatprep.subr.mxu0 0.0
  %1416 = vmatpush1.msra.mxu0 0.0
  %1417 = vmatprep.subr.mxu0 0.0
  %1418 = vmatpush1.msra.mxu0 %v1032
  %1419 = vmatprep.subr.mxu0 0.0
  %1420 = vmatpush1.msra.mxu0 %v1031
  %1421 = vmatprep.subr.mxu0 0.0
  %1422 = vmatpush1.msra.mxu0 %v1030
  %1423 = vmatprep.subr.mxu0 0.0
  %1424 = vmatpush1.msra.mxu0 %v1029
  %1425 = vmatprep.subr.mxu0 0.0
  %1426 = vmatpush2.msra.mxu0 0.0
  %1427 = vmatprep.subr.mxu0 0.0
  %1428 = vmatpush2.msra.mxu0 0.0
  %1429 = vmatprep.subr.mxu0 0.0
  %1430 = vmatpush2.msra.mxu0 0.0
  %1431 = vmatprep.subr.mxu0 0.0
  %1432 = vmatpush2.msra.mxu0 0.0
  %1433 = vmatprep.subr.mxu0 0.0
  %1434 = vmatpush2.msra.mxu0 0.0
  %1435 = vmatprep.subr.mxu0 0.0
  %1436 = vmatpush2.msra.mxu0 0.0
  %1437 = vmatprep.subr.mxu0 0.0
  %1438 = vmatpush2.msra.mxu0 0.0
  %1439 = vmatprep.subr.mxu0 0.0
  %1440 = vmatpush2.msra.mxu0 0.0
  %1441 = vmatprep.subr.mxu0 0.0
  %1442 = vmatpush2.msra.mxu0 0.0
  %1443 = vmatprep.subr.mxu0 0.0
  %1444 = vmatpush2.msra.mxu0 0.0
  %1445 = vmatprep.subr.mxu0 0.0
  %1446 = vmatpush2.msra.mxu0 0.0
  %1447 = vmatprep.subr.mxu0 0.0
  %1448 = vmatpush2.msra.mxu0 0.0
  %1449 = vmatprep.subr.mxu0 0.0
  %1450 = vmatpush2.msra.mxu0 0.0
  %1451 = vmatprep.subr.mxu0 0.0
  %1452 = vmatpush2.msra.mxu0 0.0
  %1453 = vmatprep.subr.mxu0 0.0
  %1454 = vmatpush2.msra.mxu0 0.0
  %1455 = vmatprep.subr.mxu0 0.0
  %1456 = vmatpush2.msra.mxu0 0.0
  %1457 = vmatprep.mubr.f32.mxu0 0.0
  %1458 = vmatmul.mubr.f32.gmra.mxu0 %v1391
  %v1459 = vpop.f32.mrf.mxu0
  %v1460 = vadd.f32 0.0, %v1459
  %v1461 = vpop.f32.mrf.mxu0
  %1462 = vdwg.mxu0
  %v1463 = vadd.f32 %v1390, %v1460
  %v1464 = vxor.u32 %v1463, 2147483648
  %v1465 = vmul.f32 %v1464, 1.442695
  %v1466 = vpow.pop %v1465
  %v1467 = vadd.f32 %v1466, 1.0
  %v1468 = vrcp.pop %v1467
  %v1469 = vmul.f32 1.0, %v1468
  %v1470 = vtanh.pop %v1463
  %v1471 = vmul.f32 %v1469, %v1378
  %1473 = vrot.lane.b32.xlu0 %v1470, 64
  %v1474 = vpop.permute.xlu0 %1473
  %v1476 = vmul.f32 %v1469, %v1474
  %1478 = vrot.lane.b32.xlu0 %v1476, 32
  %v1479 = vpop.permute.xlu0 %1478
  %v1481 = vadd.f32 %v1471, %v1479
  %v1482 = vtanh.pop %v1481
  %1484 = vrot.lane.b32.xlu0 %v1482, 64
  %v1485 = vpop.permute.xlu0 %1484
  %v1487 = vmul.f32 %v1469, %v1485
  %1489 = vrot.lane.b32.xlu0 %v1487, 32
  %v1490 = vpop.permute.xlu0 %1489
  %1492 = vst.msk [vmem:[%s496] sm:$0xff] %vm46, %v1490
  %v1493 = vld [vmem:[%s498] sm:$0xff]
  %v1494 = vsel %vm46, %v1490, 0
  %1496 = vmatprep.subr.mxu0 0.0
  %1497 = vmatpush1.msra.mxu0 0.0
  %1498 = vmatprep.subr.mxu0 0.0
  %1499 = vmatpush1.msra.mxu0 0.0
  %1500 = vmatprep.subr.mxu0 0.0
  %1501 = vmatpush1.msra.mxu0 0.0
  %1502 = vmatprep.subr.mxu0 0.0
  %1503 = vmatpush1.msra.mxu0 0.0
  %1504 = vmatprep.subr.mxu0 0.0
  %1505 = vmatpush1.msra.mxu0 0.0
  %1506 = vmatprep.subr.mxu0 0.0
  %1507 = vmatpush1.msra.mxu0 0.0
  %1508 = vmatprep.subr.mxu0 0.0
  %1509 = vmatpush1.msra.mxu0 0.0
  %1510 = vmatprep.subr.mxu0 0.0
  %1511 = vmatpush1.msra.mxu0 0.0
  %1512 = vmatprep.subr.mxu0 0.0
  %1513 = vmatpush1.msra.mxu0 0.0
  %1514 = vmatprep.subr.mxu0 0.0
  %1515 = vmatpush1.msra.mxu0 0.0
  %1516 = vmatprep.subr.mxu0 0.0
  %1517 = vmatpush1.msra.mxu0 0.0
  %1518 = vmatprep.subr.mxu0 0.0
  %1519 = vmatpush1.msra.mxu0 0.0
  %1520 = vmatprep.subr.mxu0 0.0
  %1521 = vmatpush1.msra.mxu0 %v1032
  %1522 = vmatprep.subr.mxu0 0.0
  %1523 = vmatpush1.msra.mxu0 %v1031
  %1524 = vmatprep.subr.mxu0 0.0
  %1525 = vmatpush1.msra.mxu0 %v1030
  %1526 = vmatprep.subr.mxu0 0.0
  %1527 = vmatpush1.msra.mxu0 %v1029
  %1528 = vmatprep.subr.mxu0 0.0
  %1529 = vmatpush2.msra.mxu0 0.0
  %1530 = vmatprep.subr.mxu0 0.0
  %1531 = vmatpush2.msra.mxu0 0.0
  %1532 = vmatprep.subr.mxu0 0.0
  %1533 = vmatpush2.msra.mxu0 0.0
  %1534 = vmatprep.subr.mxu0 0.0
  %1535 = vmatpush2.msra.mxu0 0.0
  %1536 = vmatprep.subr.mxu0 0.0
  %1537 = vmatpush2.msra.mxu0 0.0
  %1538 = vmatprep.subr.mxu0 0.0
  %1539 = vmatpush2.msra.mxu0 0.0
  %1540 = vmatprep.subr.mxu0 0.0
  %1541 = vmatpush2.msra.mxu0 0.0
  %1542 = vmatprep.subr.mxu0 0.0
  %1543 = vmatpush2.msra.mxu0 0.0
  %1544 = vmatprep.subr.mxu0 0.0
  %1545 = vmatpush2.msra.mxu0 0.0
  %1546 = vmatprep.subr.mxu0 0.0
  %1547 = vmatpush2.msra.mxu0 0.0
  %1548 = vmatprep.subr.mxu0 0.0
  %1549 = vmatpush2.msra.mxu0 0.0
  %1550 = vmatprep.subr.mxu0 0.0
  %1551 = vmatpush2.msra.mxu0 0.0
  %1552 = vmatprep.subr.mxu0 0.0
  %1553 = vmatpush2.msra.mxu0 0.0
  %1554 = vmatprep.subr.mxu0 0.0
  %1555 = vmatpush2.msra.mxu0 0.0
  %1556 = vmatprep.subr.mxu0 0.0
  %1557 = vmatpush2.msra.mxu0 0.0
  %1558 = vmatprep.subr.mxu0 0.0
  %1559 = vmatpush2.msra.mxu0 0.0
  %1560 = vmatprep.mubr.f32.mxu0 0.0
  %1561 = vmatmul.mubr.f32.gmra.mxu0 %v1494
  %v1562 = vpop.f32.mrf.mxu0
  %v1563 = vadd.f32 0.0, %v1562
  %v1564 = vpop.f32.mrf.mxu0
  %1565 = vdwg.mxu0
  %v1566 = vadd.f32 %v1493, %v1563
  %v1567 = vxor.u32 %v1566, 2147483648
  %v1568 = vmul.f32 %v1567, 1.442695
  %v1569 = vpow.pop %v1568
  %v1570 = vadd.f32 %v1569, 1.0
  %v1571 = vrcp.pop %v1570
  %v1572 = vmul.f32 1.0, %v1571
  %v1573 = vtanh.pop %v1566
  %v1574 = vmul.f32 %v1572, %v1481
  %1576 = vrot.lane.b32.xlu0 %v1573, 64
  %v1577 = vpop.permute.xlu0 %1576
  %v1579 = vmul.f32 %v1572, %v1577
  %1581 = vrot.lane.b32.xlu0 %v1579, 32
  %v1582 = vpop.permute.xlu0 %1581
  %v1584 = vadd.f32 %v1574, %v1582
  %v1585 = vtanh.pop %v1584
  %1587 = vrot.lane.b32.xlu0 %v1585, 64
  %v1588 = vpop.permute.xlu0 %1587
  %v1590 = vmul.f32 %v1572, %v1588
  %1592 = vrot.lane.b32.xlu0 %v1590, 32
  %v1593 = vpop.permute.xlu0 %1592
  %1595 = vst.msk [vmem:[%s601] sm:$0xff] %vm46, %v1593
  %v1596 = vld [vmem:[%s603] sm:$0xff]
  %v1597 = vsel %vm46, %v1593, 0
  %1599 = vmatprep.subr.mxu0 0.0
  %1600 = vmatpush1.msra.mxu0 0.0
  %1601 = vmatprep.subr.mxu0 0.0
  %1602 = vmatpush1.msra.mxu0 0.0
  %1603 = vmatprep.subr.mxu0 0.0
  %1604 = vmatpush1.msra.mxu0 0.0
  %1605 = vmatprep.subr.mxu0 0.0
  %1606 = vmatpush1.msra.mxu0 0.0
  %1607 = vmatprep.subr.mxu0 0.0
  %1608 = vmatpush1.msra.mxu0 0.0
  %1609 = vmatprep.subr.mxu0 0.0
  %1610 = vmatpush1.msra.mxu0 0.0
  %1611 = vmatprep.subr.mxu0 0.0
  %1612 = vmatpush1.msra.mxu0 0.0
  %1613 = vmatprep.subr.mxu0 0.0
  %1614 = vmatpush1.msra.mxu0 0.0
  %1615 = vmatprep.subr.mxu0 0.0
  %1616 = vmatpush1.msra.mxu0 0.0
  %1617 = vmatprep.subr.mxu0 0.0
  %1618 = vmatpush1.msra.mxu0 0.0
  %1619 = vmatprep.subr.mxu0 0.0
  %1620 = vmatpush1.msra.mxu0 0.0
  %1621 = vmatprep.subr.mxu0 0.0
  %1622 = vmatpush1.msra.mxu0 0.0
  %1623 = vmatprep.subr.mxu0 0.0
  %1624 = vmatpush1.msra.mxu0 %v1032
  %1625 = vmatprep.subr.mxu0 0.0
  %1626 = vmatpush1.msra.mxu0 %v1031
  %1627 = vmatprep.subr.mxu0 0.0
  %1628 = vmatpush1.msra.mxu0 %v1030
  %1629 = vmatprep.subr.mxu0 0.0
  %1630 = vmatpush1.msra.mxu0 %v1029
  %1631 = vmatprep.subr.mxu0 0.0
  %1632 = vmatpush2.msra.mxu0 0.0
  %1633 = vmatprep.subr.mxu0 0.0
  %1634 = vmatpush2.msra.mxu0 0.0
  %1635 = vmatprep.subr.mxu0 0.0
  %1636 = vmatpush2.msra.mxu0 0.0
  %1637 = vmatprep.subr.mxu0 0.0
  %1638 = vmatpush2.msra.mxu0 0.0
  %1639 = vmatprep.subr.mxu0 0.0
  %1640 = vmatpush2.msra.mxu0 0.0
  %1641 = vmatprep.subr.mxu0 0.0
  %1642 = vmatpush2.msra.mxu0 0.0
  %1643 = vmatprep.subr.mxu0 0.0
  %1644 = vmatpush2.msra.mxu0 0.0
  %1645 = vmatprep.subr.mxu0 0.0
  %1646 = vmatpush2.msra.mxu0 0.0
  %1647 = vmatprep.subr.mxu0 0.0
  %1648 = vmatpush2.msra.mxu0 0.0
  %1649 = vmatprep.subr.mxu0 0.0
  %1650 = vmatpush2.msra.mxu0 0.0
  %1651 = vmatprep.subr.mxu0 0.0
  %1652 = vmatpush2.msra.mxu0 0.0
  %1653 = vmatprep.subr.mxu0 0.0
  %1654 = vmatpush2.msra.mxu0 0.0
  %1655 = vmatprep.subr.mxu0 0.0
  %1656 = vmatpush2.msra.mxu0 0.0
  %1657 = vmatprep.subr.mxu0 0.0
  %1658 = vmatpush2.msra.mxu0 0.0
  %1659 = vmatprep.subr.mxu0 0.0
  %1660 = vmatpush2.msra.mxu0 0.0
  %1661 = vmatprep.subr.mxu0 0.0
  %1662 = vmatpush2.msra.mxu0 0.0
  %1663 = vmatprep.mubr.f32.mxu0 0.0
  %1664 = vmatmul.mubr.f32.gmra.mxu0 %v1597
  %v1665 = vpop.f32.mrf.mxu0
  %v1666 = vadd.f32 0.0, %v1665
  %v1667 = vpop.f32.mrf.mxu0
  %1668 = vdwg.mxu0
  %v1669 = vadd.f32 %v1596, %v1666
  %v1670 = vxor.u32 %v1669, 2147483648
  %v1671 = vmul.f32 %v1670, 1.442695
  %v1672 = vpow.pop %v1671
  %v1673 = vadd.f32 %v1672, 1.0
  %v1674 = vrcp.pop %v1673
  %v1675 = vmul.f32 1.0, %v1674
  %v1676 = vtanh.pop %v1669
  %v1677 = vmul.f32 %v1675, %v1584
  %1679 = vrot.lane.b32.xlu0 %v1676, 64
  %v1680 = vpop.permute.xlu0 %1679
  %v1682 = vmul.f32 %v1675, %v1680
  %1684 = vrot.lane.b32.xlu0 %v1682, 32
  %v1685 = vpop.permute.xlu0 %1684
  %v1687 = vadd.f32 %v1677, %v1685
  %v1688 = vtanh.pop %v1687
  %1690 = vrot.lane.b32.xlu0 %v1688, 64
  %v1691 = vpop.permute.xlu0 %1690
  %v1693 = vmul.f32 %v1675, %v1691
  %1695 = vrot.lane.b32.xlu0 %v1693, 32
  %v1696 = vpop.permute.xlu0 %1695
  %1698 = vst.msk [vmem:[%s706] sm:$0xff] %vm46, %v1696
  %v1699 = vld [vmem:[%s708] sm:$0xff]
  %v1700 = vsel %vm46, %v1696, 0
  %1702 = vmatprep.subr.mxu0 0.0
  %1703 = vmatpush1.msra.mxu0 0.0
  %1704 = vmatprep.subr.mxu0 0.0
  %1705 = vmatpush1.msra.mxu0 0.0
  %1706 = vmatprep.subr.mxu0 0.0
  %1707 = vmatpush1.msra.mxu0 0.0
  %1708 = vmatprep.subr.mxu0 0.0
  %1709 = vmatpush1.msra.mxu0 0.0
  %1710 = vmatprep.subr.mxu0 0.0
  %1711 = vmatpush1.msra.mxu0 0.0
  %1712 = vmatprep.subr.mxu0 0.0
  %1713 = vmatpush1.msra.mxu0 0.0
  %1714 = vmatprep.subr.mxu0 0.0
  %1715 = vmatpush1.msra.mxu0 0.0
  %1716 = vmatprep.subr.mxu0 0.0
  %1717 = vmatpush1.msra.mxu0 0.0
  %1718 = vmatprep.subr.mxu0 0.0
  %1719 = vmatpush1.msra.mxu0 0.0
  %1720 = vmatprep.subr.mxu0 0.0
  %1721 = vmatpush1.msra.mxu0 0.0
  %1722 = vmatprep.subr.mxu0 0.0
  %1723 = vmatpush1.msra.mxu0 0.0
  %1724 = vmatprep.subr.mxu0 0.0
  %1725 = vmatpush1.msra.mxu0 0.0
  %1726 = vmatprep.subr.mxu0 0.0
  %1727 = vmatpush1.msra.mxu0 %v1032
  %1728 = vmatprep.subr.mxu0 0.0
  %1729 = vmatpush1.msra.mxu0 %v1031
  %1730 = vmatprep.subr.mxu0 0.0
  %1731 = vmatpush1.msra.mxu0 %v1030
  %1732 = vmatprep.subr.mxu0 0.0
  %1733 = vmatpush1.msra.mxu0 %v1029
  %1734 = vmatprep.subr.mxu0 0.0
  %1735 = vmatpush2.msra.mxu0 0.0
  %1736 = vmatprep.subr.mxu0 0.0
  %1737 = vmatpush2.msra.mxu0 0.0
  %1738 = vmatprep.subr.mxu0 0.0
  %1739 = vmatpush2.msra.mxu0 0.0
  %1740 = vmatprep.subr.mxu0 0.0
  %1741 = vmatpush2.msra.mxu0 0.0
  %1742 = vmatprep.subr.mxu0 0.0
  %1743 = vmatpush2.msra.mxu0 0.0
  %1744 = vmatprep.subr.mxu0 0.0
  %1745 = vmatpush2.msra.mxu0 0.0
  %1746 = vmatprep.subr.mxu0 0.0
  %1747 = vmatpush2.msra.mxu0 0.0
  %1748 = vmatprep.subr.mxu0 0.0
  %1749 = vmatpush2.msra.mxu0 0.0
  %1750 = vmatprep.subr.mxu0 0.0
  %1751 = vmatpush2.msra.mxu0 0.0
  %1752 = vmatprep.subr.mxu0 0.0
  %1753 = vmatpush2.msra.mxu0 0.0
  %1754 = vmatprep.subr.mxu0 0.0
  %1755 = vmatpush2.msra.mxu0 0.0
  %1756 = vmatprep.subr.mxu0 0.0
  %1757 = vmatpush2.msra.mxu0 0.0
  %1758 = vmatprep.subr.mxu0 0.0
  %1759 = vmatpush2.msra.mxu0 0.0
  %1760 = vmatprep.subr.mxu0 0.0
  %1761 = vmatpush2.msra.mxu0 0.0
  %1762 = vmatprep.subr.mxu0 0.0
  %1763 = vmatpush2.msra.mxu0 0.0
  %1764 = vmatprep.subr.mxu0 0.0
  %1765 = vmatpush2.msra.mxu0 0.0
  %1766 = vmatprep.mubr.f32.mxu0 0.0
  %1767 = vmatmul.mubr.f32.gmra.mxu0 %v1700
  %v1768 = vpop.f32.mrf.mxu0
  %v1769 = vadd.f32 0.0, %v1768
  %v1770 = vpop.f32.mrf.mxu0
  %1771 = vdwg.mxu0
  %v1772 = vadd.f32 %v1699, %v1769
  %v1773 = vxor.u32 %v1772, 2147483648
  %v1774 = vmul.f32 %v1773, 1.442695
  %v1775 = vpow.pop %v1774
  %v1776 = vadd.f32 %v1775, 1.0
  %v1777 = vrcp.pop %v1776
  %v1778 = vmul.f32 1.0, %v1777
  %v1779 = vtanh.pop %v1772
  %v1780 = vmul.f32 %v1778, %v1687
  %1782 = vrot.lane.b32.xlu0 %v1779, 64
  %v1783 = vpop.permute.xlu0 %1782
  %v1785 = vmul.f32 %v1778, %v1783
  %1787 = vrot.lane.b32.xlu0 %v1785, 32
  %v1788 = vpop.permute.xlu0 %1787
  %v1790 = vadd.f32 %v1780, %v1788
  %v1791 = vtanh.pop %v1790
  %1793 = vrot.lane.b32.xlu0 %v1791, 64
  %v1794 = vpop.permute.xlu0 %1793
  %v1796 = vmul.f32 %v1778, %v1794
  %1798 = vrot.lane.b32.xlu0 %v1796, 32
  %v1799 = vpop.permute.xlu0 %1798
  %1801 = vst.msk [vmem:[%s811] sm:$0xff] %vm46, %v1799
  %v1802 = vld [vmem:[%s813] sm:$0xff]
  %v1803 = vsel %vm46, %v1799, 0
  %1805 = vmatprep.subr.mxu0 0.0
  %1806 = vmatpush1.msra.mxu0 0.0
  %1807 = vmatprep.subr.mxu0 0.0
  %1808 = vmatpush1.msra.mxu0 0.0
  %1809 = vmatprep.subr.mxu0 0.0
  %1810 = vmatpush1.msra.mxu0 0.0
  %1811 = vmatprep.subr.mxu0 0.0
  %1812 = vmatpush1.msra.mxu0 0.0
  %1813 = vmatprep.subr.mxu0 0.0
  %1814 = vmatpush1.msra.mxu0 0.0
  %1815 = vmatprep.subr.mxu0 0.0
  %1816 = vmatpush1.msra.mxu0 0.0
  %1817 = vmatprep.subr.mxu0 0.0
  %1818 = vmatpush1.msra.mxu0 0.0
  %1819 = vmatprep.subr.mxu0 0.0
  %1820 = vmatpush1.msra.mxu0 0.0
  %1821 = vmatprep.subr.mxu0 0.0
  %1822 = vmatpush1.msra.mxu0 0.0
  %1823 = vmatprep.subr.mxu0 0.0
  %1824 = vmatpush1.msra.mxu0 0.0
  %1825 = vmatprep.subr.mxu0 0.0
  %1826 = vmatpush1.msra.mxu0 0.0
  %1827 = vmatprep.subr.mxu0 0.0
  %1828 = vmatpush1.msra.mxu0 0.0
  %1829 = vmatprep.subr.mxu0 0.0
  %1830 = vmatpush1.msra.mxu0 %v1032
  %1831 = vmatprep.subr.mxu0 0.0
  %1832 = vmatpush1.msra.mxu0 %v1031
  %1833 = vmatprep.subr.mxu0 0.0
  %1834 = vmatpush1.msra.mxu0 %v1030
  %1835 = vmatprep.subr.mxu0 0.0
  %1836 = vmatpush1.msra.mxu0 %v1029
  %1837 = vmatprep.subr.mxu0 0.0
  %1838 = vmatpush2.msra.mxu0 0.0
  %1839 = vmatprep.subr.mxu0 0.0
  %1840 = vmatpush2.msra.mxu0 0.0
  %1841 = vmatprep.subr.mxu0 0.0
  %1842 = vmatpush2.msra.mxu0 0.0
  %1843 = vmatprep.subr.mxu0 0.0
  %1844 = vmatpush2.msra.mxu0 0.0
  %1845 = vmatprep.subr.mxu0 0.0
  %1846 = vmatpush2.msra.mxu0 0.0
  %1847 = vmatprep.subr.mxu0 0.0
  %1848 = vmatpush2.msra.mxu0 0.0
  %1849 = vmatprep.subr.mxu0 0.0
  %1850 = vmatpush2.msra.mxu0 0.0
  %1851 = vmatprep.subr.mxu0 0.0
  %1852 = vmatpush2.msra.mxu0 0.0
  %1853 = vmatprep.subr.mxu0 0.0
  %1854 = vmatpush2.msra.mxu0 0.0
  %1855 = vmatprep.subr.mxu0 0.0
  %1856 = vmatpush2.msra.mxu0 0.0
  %1857 = vmatprep.subr.mxu0 0.0
  %1858 = vmatpush2.msra.mxu0 0.0
  %1859 = vmatprep.subr.mxu0 0.0
  %1860 = vmatpush2.msra.mxu0 0.0
  %1861 = vmatprep.subr.mxu0 0.0
  %1862 = vmatpush2.msra.mxu0 0.0
  %1863 = vmatprep.subr.mxu0 0.0
  %1864 = vmatpush2.msra.mxu0 0.0
  %1865 = vmatprep.subr.mxu0 0.0
  %1866 = vmatpush2.msra.mxu0 0.0
  %1867 = vmatprep.subr.mxu0 0.0
  %1868 = vmatpush2.msra.mxu0 0.0
  %1869 = vmatprep.mubr.f32.mxu0 0.0
  %1870 = vmatmul.mubr.f32.gmra.mxu0 %v1803
  %v1871 = vpop.f32.mrf.mxu0
  %v1872 = vadd.f32 0.0, %v1871
  %v1873 = vpop.f32.mrf.mxu0
  %1874 = vdwg.mxu0
  %v1875 = vadd.f32 %v1802, %v1872
  %v1876 = vxor.u32 %v1875, 2147483648
  %v1877 = vmul.f32 %v1876, 1.442695
  %v1878 = vpow.pop %v1877
  %v1879 = vadd.f32 %v1878, 1.0
  %v1880 = vrcp.pop %v1879
  %v1881 = vmul.f32 1.0, %v1880
  %v1882 = vtanh.pop %v1875
  %v1883 = vmul.f32 %v1881, %v1790
  %1885 = vrot.lane.b32.xlu0 %v1882, 64
  %v1886 = vpop.permute.xlu0 %1885
  %v1888 = vmul.f32 %v1881, %v1886
  %1890 = vrot.lane.b32.xlu0 %v1888, 32
  %v1891 = vpop.permute.xlu0 %1890
  %v1893 = vadd.f32 %v1883, %v1891
  %v1894 = vtanh.pop %v1893
  %1896 = vrot.lane.b32.xlu0 %v1894, 64
  %v1897 = vpop.permute.xlu0 %1896
  %v1899 = vmul.f32 %v1881, %v1897
  %1901 = vrot.lane.b32.xlu0 %v1899, 32
  %v1902 = vpop.permute.xlu0 %1901
  %1904 = vst.msk [vmem:[%s916] sm:$0xff] %vm46, %v1902
  %v1905 = vld [vmem:[%s918] sm:$0xff]
  %v1906 = vsel %vm46, %v1902, 0
  %1908 = vmatprep.subr.mxu0 0.0
  %1909 = vmatpush1.msra.mxu0 0.0
  %1910 = vmatprep.subr.mxu0 0.0
  %1911 = vmatpush1.msra.mxu0 0.0
  %1912 = vmatprep.subr.mxu0 0.0
  %1913 = vmatpush1.msra.mxu0 0.0
  %1914 = vmatprep.subr.mxu0 0.0
  %1915 = vmatpush1.msra.mxu0 0.0
  %1916 = vmatprep.subr.mxu0 0.0
  %1917 = vmatpush1.msra.mxu0 0.0
  %1918 = vmatprep.subr.mxu0 0.0
  %1919 = vmatpush1.msra.mxu0 0.0
  %1920 = vmatprep.subr.mxu0 0.0
  %1921 = vmatpush1.msra.mxu0 0.0
  %1922 = vmatprep.subr.mxu0 0.0
  %1923 = vmatpush1.msra.mxu0 0.0
  %1924 = vmatprep.subr.mxu0 0.0
  %1925 = vmatpush1.msra.mxu0 0.0
  %1926 = vmatprep.subr.mxu0 0.0
  %1927 = vmatpush1.msra.mxu0 0.0
  %1928 = vmatprep.subr.mxu0 0.0
  %1929 = vmatpush1.msra.mxu0 0.0
  %1930 = vmatprep.subr.mxu0 0.0
  %1931 = vmatpush1.msra.mxu0 0.0
  %1932 = vmatprep.subr.mxu0 0.0
  %1933 = vmatpush1.msra.mxu0 %v1032
  %1934 = vmatprep.subr.mxu0 0.0
  %1935 = vmatpush1.msra.mxu0 %v1031
  %1936 = vmatprep.subr.mxu0 0.0
  %1937 = vmatpush1.msra.mxu0 %v1030
  %1938 = vmatprep.subr.mxu0 0.0
  %1939 = vmatpush1.msra.mxu0 %v1029
  %1940 = vmatprep.subr.mxu0 0.0
  %1941 = vmatpush2.msra.mxu0 0.0
  %1942 = vmatprep.subr.mxu0 0.0
  %1943 = vmatpush2.msra.mxu0 0.0
  %1944 = vmatprep.subr.mxu0 0.0
  %1945 = vmatpush2.msra.mxu0 0.0
  %1946 = vmatprep.subr.mxu0 0.0
  %1947 = vmatpush2.msra.mxu0 0.0
  %1948 = vmatprep.subr.mxu0 0.0
  %1949 = vmatpush2.msra.mxu0 0.0
  %1950 = vmatprep.subr.mxu0 0.0
  %1951 = vmatpush2.msra.mxu0 0.0
  %1952 = vmatprep.subr.mxu0 0.0
  %1953 = vmatpush2.msra.mxu0 0.0
  %1954 = vmatprep.subr.mxu0 0.0
  %1955 = vmatpush2.msra.mxu0 0.0
  %1956 = vmatprep.subr.mxu0 0.0
  %1957 = vmatpush2.msra.mxu0 0.0
  %1958 = vmatprep.subr.mxu0 0.0
  %1959 = vmatpush2.msra.mxu0 0.0
  %1960 = vmatprep.subr.mxu0 0.0
  %1961 = vmatpush2.msra.mxu0 0.0
  %1962 = vmatprep.subr.mxu0 0.0
  %1963 = vmatpush2.msra.mxu0 0.0
  %1964 = vmatprep.subr.mxu0 0.0
  %1965 = vmatpush2.msra.mxu0 0.0
  %1966 = vmatprep.subr.mxu0 0.0
  %1967 = vmatpush2.msra.mxu0 0.0
  %1968 = vmatprep.subr.mxu0 0.0
  %1969 = vmatpush2.msra.mxu0 0.0
  %1970 = vmatprep.subr.mxu0 0.0
  %1971 = vmatpush2.msra.mxu0 0.0
  %1972 = vmatprep.mubr.f32.mxu0 0.0
  %1973 = vmatmul.mubr.f32.gmra.mxu0 %v1906
  %v1974 = vpop.f32.mrf.mxu0
  %v1975 = vadd.f32 0.0, %v1974
  %v1976 = vpop.f32.mrf.mxu0
  %1977 = vdwg.mxu0
  %v1978 = vadd.f32 %v1905, %v1975
  %v1979 = vxor.u32 %v1978, 2147483648
  %v1980 = vmul.f32 %v1979, 1.442695
  %v1981 = vpow.pop %v1980
  %v1982 = vadd.f32 %v1981, 1.0
  %v1983 = vrcp.pop %v1982
  %v1984 = vmul.f32 1.0, %v1983
  %v1985 = vtanh.pop %v1978
  %v1986 = vmul.f32 %v1984, %v1893
  %1988 = vrot.lane.b32.xlu0 %v1985, 64
  %v1989 = vpop.permute.xlu0 %1988
  %v1991 = vmul.f32 %v1984, %v1989
  %1993 = vrot.lane.b32.xlu0 %v1991, 32
  %v1994 = vpop.permute.xlu0 %1993
  %v1996 = vadd.f32 %v1986, %v1994
  %v1997 = vtanh.pop %v1996
  %1999 = vrot.lane.b32.xlu0 %v1997, 64
  %v2000 = vpop.permute.xlu0 %1999
  %v2002 = vmul.f32 %v1984, %v2000
  %2004 = vrot.lane.b32.xlu0 %v2002, 32
  %v2005 = vpop.permute.xlu0 %2004
  %2007 = vst.msk [vmem:[%s1021] sm:$0xff] %vm46, %v2005
  %v2008 = vld [vmem:[#allocation3] sm:$0xff]
  %v2009 = vld [vmem:[#allocation3 + $0x8] sm:$0xff]
  %v2010 = vld [vmem:[#allocation3 + $0x10] sm:$0xff]
  %v2011 = vld [vmem:[#allocation3 + $0x18] sm:$0xff]
  %v2012 = vld [vmem:[#allocation3 + $0x20] sm:$0xff]
  %v2013 = vld [vmem:[#allocation3 + $0x28] sm:$0xff]
  %v2014 = vld [vmem:[#allocation3 + $0x30] sm:$0xff]
  %v2015 = vld [vmem:[#allocation3 + $0x38] sm:$0xff]
  %v2016 = vld [vmem:[%s4] sm:$0xff]
  %v2017 = vld [vmem:[%s4 + $0x8] sm:$0xff]
  %v2018 = vld [vmem:[%s4 + $0x10] sm:$0xff]
  %v2019 = vld [vmem:[%s4 + $0x18] sm:$0xff]
  %v2020 = vld [vmem:[%s5] sm:$0x1]
  %v2022 = vlaneseq
  %v2023 = vshrl.u32 %v2022, 7
  %v2024 = vsub.s32 0, %v2023
  %v2025 = vrot.slane %v2020, %v2024
  %v2028 = vsel %vm46, %v2008, 0
  %v2031 = vsel %vm46, %v2009, 0
  %v2034 = vsel %vm46, %v2010, 0
  %v2037 = vsel %vm46, %v2011, 0
  %v2040 = vsel %vm46, %v2012, 0
  %v2043 = vsel %vm46, %v2013, 0
  %v2046 = vsel %vm46, %v2014, 0
  %v2049 = vsel %vm46, %v2015, 0
  %2051 = vmatprep.subr.mxu0 0.0
  %2052 = vmatpush1.msra.mxu0 0.0
  %2053 = vmatprep.subr.mxu0 0.0
  %2054 = vmatpush1.msra.mxu0 0.0
  %2055 = vmatprep.subr.mxu0 0.0
  %2056 = vmatpush1.msra.mxu0 0.0
  %2057 = vmatprep.subr.mxu0 0.0
  %2058 = vmatpush1.msra.mxu0 0.0
  %2059 = vmatprep.subr.mxu0 0.0
  %2060 = vmatpush1.msra.mxu0 0.0
  %2061 = vmatprep.subr.mxu0 0.0
  %2062 = vmatpush1.msra.mxu0 0.0
  %2063 = vmatprep.subr.mxu0 0.0
  %2064 = vmatpush1.msra.mxu0 0.0
  %2065 = vmatprep.subr.mxu0 0.0
  %2066 = vmatpush1.msra.mxu0 0.0
  %2067 = vmatprep.subr.mxu0 0.0
  %2068 = vmatpush1.msra.mxu0 0.0
  %2069 = vmatprep.subr.mxu0 0.0
  %2070 = vmatpush1.msra.mxu0 0.0
  %2071 = vmatprep.subr.mxu0 0.0
  %2072 = vmatpush1.msra.mxu0 0.0
  %2073 = vmatprep.subr.mxu0 0.0
  %2074 = vmatpush1.msra.mxu0 0.0
  %2075 = vmatprep.subr.mxu0 0.0
  %2076 = vmatpush1.msra.mxu0 %v2019
  %2077 = vmatprep.subr.mxu0 0.0
  %2078 = vmatpush1.msra.mxu0 %v2018
  %2079 = vmatprep.subr.mxu0 0.0
  %2080 = vmatpush1.msra.mxu0 %v2017
  %2081 = vmatprep.subr.mxu0 0.0
  %2082 = vmatpush1.msra.mxu0 %v2016
  %2083 = vmatprep.subr.mxu0 0.0
  %2084 = vmatpush2.msra.mxu0 0.0
  %2085 = vmatprep.subr.mxu0 0.0
  %2086 = vmatpush2.msra.mxu0 0.0
  %2087 = vmatprep.subr.mxu0 0.0
  %2088 = vmatpush2.msra.mxu0 0.0
  %2089 = vmatprep.subr.mxu0 0.0
  %2090 = vmatpush2.msra.mxu0 0.0
  %2091 = vmatprep.subr.mxu0 0.0
  %2092 = vmatpush2.msra.mxu0 0.0
  %2093 = vmatprep.subr.mxu0 0.0
  %2094 = vmatpush2.msra.mxu0 0.0
  %2095 = vmatprep.subr.mxu0 0.0
  %2096 = vmatpush2.msra.mxu0 0.0
  %2097 = vmatprep.subr.mxu0 0.0
  %2098 = vmatpush2.msra.mxu0 0.0
  %2099 = vmatprep.subr.mxu0 0.0
  %2100 = vmatpush2.msra.mxu0 0.0
  %2101 = vmatprep.subr.mxu0 0.0
  %2102 = vmatpush2.msra.mxu0 0.0
  %2103 = vmatprep.subr.mxu0 0.0
  %2104 = vmatpush2.msra.mxu0 0.0
  %2105 = vmatprep.subr.mxu0 0.0
  %2106 = vmatpush2.msra.mxu0 0.0
  %2107 = vmatprep.subr.mxu0 0.0
  %2108 = vmatpush2.msra.mxu0 0.0
  %2109 = vmatprep.subr.mxu0 0.0
  %2110 = vmatpush2.msra.mxu0 0.0
  %2111 = vmatprep.subr.mxu0 0.0
  %2112 = vmatpush2.msra.mxu0 0.0
  %2113 = vmatprep.subr.mxu0 0.0
  %2114 = vmatpush2.msra.mxu0 0.0
  %2115 = vmatprep.mubr.f32.mxu0 0.0
  %2116 = vmatmul.mubr.f32.gmra.mxu0 %v2028
  %v2117 = vpop.f32.mrf.mxu0
  %v2118 = vadd.f32 %v2025, %v2117
  %v2119 = vpop.f32.mrf.mxu0
  %2120 = vmatprep.mubr.f32.mxu0 0.0
  %2121 = vmatmul.mubr.f32.gmra.mxu0 %v2031
  %v2122 = vpop.f32.mrf.mxu0
  %v2123 = vadd.f32 %v2025, %v2122
  %v2124 = vpop.f32.mrf.mxu0
  %2125 = vmatprep.mubr.f32.mxu0 0.0
  %2126 = vmatmul.mubr.f32.gmra.mxu0 %v2034
  %v2127 = vpop.f32.mrf.mxu0
  %v2128 = vadd.f32 %v2025, %v2127
  %v2129 = vpop.f32.mrf.mxu0
  %2130 = vmatprep.mubr.f32.mxu0 0.0
  %2131 = vmatmul.mubr.f32.gmra.mxu0 %v2037
  %v2132 = vpop.f32.mrf.mxu0
  %v2133 = vadd.f32 %v2025, %v2132
  %v2134 = vpop.f32.mrf.mxu0
  %2135 = vmatprep.mubr.f32.mxu0 0.0
  %2136 = vmatmul.mubr.f32.gmra.mxu0 %v2040
  %v2137 = vpop.f32.mrf.mxu0
  %v2138 = vadd.f32 %v2025, %v2137
  %v2139 = vpop.f32.mrf.mxu0
  %2140 = vmatprep.mubr.f32.mxu0 0.0
  %2141 = vmatmul.mubr.f32.gmra.mxu0 %v2043
  %v2142 = vpop.f32.mrf.mxu0
  %v2143 = vadd.f32 %v2025, %v2142
  %v2144 = vpop.f32.mrf.mxu0
  %2145 = vmatprep.mubr.f32.mxu0 0.0
  %2146 = vmatmul.mubr.f32.gmra.mxu0 %v2046
  %v2147 = vpop.f32.mrf.mxu0
  %v2148 = vadd.f32 %v2025, %v2147
  %v2149 = vpop.f32.mrf.mxu0
  %2150 = vmatprep.mubr.f32.mxu0 0.0
  %2151 = vmatmul.mubr.f32.gmra.mxu0 %v2049
  %v2152 = vpop.f32.mrf.mxu0
  %v2153 = vadd.f32 %v2025, %v2152
  %v2154 = vpop.f32.mrf.mxu0
  %2155 = vdwg.mxu0
  %vm2156 = vcmask 31744
  %2157 = vst.msk [vmem:[%s6] sm:$0xff] %vm2156, %v2118
  %2158 = vst.msk [vmem:[%s6 + $0x8] sm:$0xff] %vm2156, %v2123
  %2159 = vst.msk [vmem:[%s6 + $0x10] sm:$0xff] %vm2156, %v2128
  %2160 = vst.msk [vmem:[%s6 + $0x18] sm:$0xff] %vm2156, %v2133
  %2161 = vst.msk [vmem:[%s6 + $0x20] sm:$0xff] %vm2156, %v2138
  %2162 = vst.msk [vmem:[%s6 + $0x28] sm:$0xff] %vm2156, %v2143
  %2163 = vst.msk [vmem:[%s6 + $0x30] sm:$0xff] %vm2156, %v2148
  %2164 = vst.msk [vmem:[%s6 + $0x38] sm:$0xff] %vm2156, %v2153
  // Predicated region
  $region26: #{tpu_custom_call.1} parent=0 // pred_check
    _
  $region27: #{tpu_custom_call.1} parent=0 // pred_check_branch
    %2166 = sbr.rel (0) target = $region29
  $region28: #{tpu_custom_call.1} parent=0 // pred_region
    _
  $region29: #{tpu_custom_call.1} parent=0 // pred_fallthru
    _
  // Predicated region
  $region30: #{tpu_custom_call.1} parent=0 // pred_check
    _
  $region31: #{tpu_custom_call.1} parent=0 // pred_check_branch
    %2168 = sbr.rel (0) target = $region33
  $region32: #{tpu_custom_call.1} parent=0 // pred_region
    _
  $region33: #{tpu_custom_call.1} parent=0 // pred_fallthru
    _

</llo_original>
